<compile_context>
chip_gen: v7x
topology: tpu7x:2x2x1
jax: 0.10.0
libtpu: 0.0.40
codegen_flags: <defaults>
</compile_context>

<pallas_src>
import math
import functools

import jax
import jax.numpy as jnp
import numpy as np
from jax.experimental import pallas as pl
from jax.experimental.pallas import tpu as pltpu


def _stl_kernel(ref_ref, kT_ref, v_ref, wq_ref, bq_ref, wo_ref, bo_ref,
                out_ref, ho_scratch, *, n_head, head_dim):
    # Q projection. The 1/sqrt(head_dim) softmax scale is pre-folded into
    # wq/bq by prepare_params(), and wq is pre-transposed: plain x @ W.
    ref = ref_ref[...].astype(jnp.bfloat16)                          # (B, ref_dim)
    q = jnp.dot(ref, wq_ref[...],
                preferred_element_type=jnp.float32) + bq_ref[...]    # (B, n_feat) f32
    q_bf = q.astype(jnp.bfloat16)

    # Per-head attention. Ref slices (static) are free views; only the
    # 128-row operand each matmul needs is streamed.
    for h in range(n_head):                                          # static unroll
        lo = h * head_dim
        hi = lo + head_dim
        qh = q_bf[:, lo:hi]                                          # (B, d)   bf16
        kTh = kT_ref[lo:hi, :]                                       # (d, T)   bf16
        vh = v_ref[:, lo:hi]                                         # (T, d)   bf16

        s = jnp.dot(qh, kTh, preferred_element_type=jnp.float32)     # (B, T), pre-scaled
        m = jnp.max(s, axis=-1, keepdims=True)
        e = jnp.exp(s - m)
        inv = pl.reciprocal(jnp.sum(e, axis=-1, keepdims=True), approx=True)
        p = (e * inv).astype(jnp.bfloat16)                           # (B, T)

        ho = jnp.dot(p, vh, preferred_element_type=jnp.float32)      # (B, d)
        ho_scratch[:, lo:hi] = ho.astype(jnp.bfloat16)               # concat via scratch

    # Single fused output projection over the full K=n_feat depth.
    out_ref[...] = (jnp.dot(ho_scratch[...], wo_ref[...],
                            preferred_element_type=jnp.float32)
                    + bo_ref[...]).astype(out_ref.dtype)


def prepare_params(params, *, n_head, head_dim):
    """Parameter-only precompute. Run ONCE at model load, not per forward."""
    gst, wq, bq, wk, bk, wv, bv, wo, bo = params
    scale = 1.0 / math.sqrt(head_dim)

    gst_t = jnp.tanh(gst)                                    # (T, head_dim)
    k = gst_t @ wk.T + bk                                    # (T, n_feat) f32
    v = gst_t @ wv.T + bv                                    # (T, n_feat) f32
    kT = k.T.astype(jnp.bfloat16)                            # (n_feat, T)
    v = v.astype(jnp.bfloat16)                               # (T, n_feat)

    wq_t = (wq.T * scale).astype(jnp.bfloat16)               # (ref_dim, n_feat)
    bq_s = (bq * scale).reshape(1, -1).astype(jnp.float32)   # (1, n_feat)
    wo_t = wo.T.astype(jnp.bfloat16)                         # (n_feat, n_feat)
    bo_r = bo.reshape(1, -1).astype(jnp.float32)             # (1, n_feat)
    return (kT, v, wq_t, bq_s, wo_t, bo_r)


def style_token_layer_apply(ref_embeddings, prepared, *, n_head, head_dim):
    """ref_embeddings: (B, ref_dim) f32. Returns (B, n_feat) f32."""
    kT, v, wq_t, bq_s, wo_t, bo_r = prepared
    B, ref_dim = ref_embeddings.shape
    n_feat = n_head * head_dim
    T = kT.shape[1]

    kernel = functools.partial(_stl_kernel, n_head=n_head, head_dim=head_dim)

    # Advisory cost hint so XLA schedules neighbors around this tiny call.
    itemsize = {jnp.bfloat16: 2, jnp.float32: 4}
    bytes_accessed = (
        ref_embeddings.size * 4 + kT.size * 2 + v.size * 2 + wq_t.size * 2
        + bq_s.size * 4 + wo_t.size * 2 + bo_r.size * 4 + B * n_feat * 4)
    flops = 2 * B * (ref_dim * n_feat + 2 * T * n_feat + n_feat * n_feat)
    cost = pl.CostEstimate(flops=flops,
                           transcendentals=B * n_head * T,
                           bytes_accessed=bytes_accessed)

    return pl.pallas_call(
        kernel,
        out_shape=jax.ShapeDtypeStruct((B, n_feat), jnp.float32),
        grid=(1,),
        in_specs=[
            pl.BlockSpec((B, ref_dim), lambda i: (0, 0)),       # ref
            pl.BlockSpec((n_feat, T), lambda i: (0, 0)),        # kT
            pl.BlockSpec((T, n_feat), lambda i: (0, 0)),        # v
            pl.BlockSpec((ref_dim, n_feat), lambda i: (0, 0)),  # wq_t
            pl.BlockSpec((1, n_feat), lambda i: (0, 0)),        # bq_s
            pl.BlockSpec((n_feat, n_feat), lambda i: (0, 0)),   # wo_t
            pl.BlockSpec((1, n_feat), lambda i: (0, 0)),        # bo
        ],
        out_specs=pl.BlockSpec((B, n_feat), lambda i: (0, 0)),  # lane-dense (512)
        scratch_shapes=[pltpu.VMEM((B, n_feat), jnp.bfloat16)],
        compiler_params=pltpu.CompilerParams(
            dimension_semantics=("arbitrary",)),
        cost_estimate=cost,
    )(ref_embeddings, kT, v, wq_t, bq_s, wo_t, bo_r)


def style_token_layer(ref_embeddings, params, *, n_head, head_dim):
    """Convenience one-shot path (precompute + kernel). Prefer caching
    prepare_params() at model load and calling style_token_layer_apply()."""
    prepared = prepare_params(params, n_head=n_head, head_dim=head_dim)
    return style_token_layer_apply(ref_embeddings, prepared,
                                   n_head=n_head, head_dim=head_dim)


def init_params(key, *, ref_dim, gst_tokens, n_feat, n_head):
    head_dim = n_feat // n_head
    ks = jax.random.split(key, 9)
    def lin_w(k, out_f, in_f):
        bound = 1.0 / math.sqrt(in_f)
        return jax.random.uniform(k, (out_f, in_f), jnp.float32, -bound, bound)
    def lin_b(k, out_f, in_f):
        bound = 1.0 / math.sqrt(in_f)
        return jax.random.uniform(k, (out_f,), jnp.float32, -bound, bound)
    gst = jax.random.normal(ks[0], (gst_tokens, head_dim), jnp.float32)
    wq = lin_w(ks[1], n_feat, ref_dim);   bq = lin_b(ks[2], n_feat, ref_dim)
    wk = lin_w(ks[3], n_feat, head_dim);  bk = lin_b(ks[4], n_feat, head_dim)
    wv = lin_w(ks[5], n_feat, head_dim);  bv = lin_b(ks[6], n_feat, head_dim)
    wo = lin_w(ks[7], n_feat, n_feat);    bo = lin_b(ks[8], n_feat, n_feat)
    return (gst, wq, bq, wk, bk, wv, bv, wo, bo)


def reference_jax(ref_embeddings, params, *, n_head, head_dim):
    """Pure-JAX f32 reference mirroring the PyTorch forward (dropout_rate=0)."""
    gst, wq, bq, wk, bk, wv, bv, wo, bo = params
    B = ref_embeddings.shape[0]
    gst_t = jnp.tanh(gst)[None].repeat(B, axis=0)            # (B, T, d)
    q = ref_embeddings[:, None, :] @ wq.T + bq               # (B, 1, n_feat)
    k = gst_t @ wk.T + bk                                    # (B, T, n_feat)
    v = gst_t @ wv.T + bv
    def split(x):  # (B, S, n_feat) -> (B, H, S, d)
        Bx, S, _ = x.shape
        return x.reshape(Bx, S, n_head, head_dim).transpose(0, 2, 1, 3)
    qh, kh, vh = split(q), split(k), split(v)
    s = qh @ kh.transpose(0, 1, 3, 2) / math.sqrt(head_dim)  # (B, H, 1, T)
    p = jax.nn.softmax(s, axis=-1)
    x = p @ vh                                               # (B, H, 1, d)
    x = x.transpose(0, 2, 1, 3).reshape(B, 1, n_head * head_dim)
    return (x @ wo.T + bo)[:, 0, :]


if __name__ == "__main__":
    # Module defaults: ref_embed_dim=128, gst_tokens=10, gst_token_dim=512, gst_heads=4.
    REF_DIM, GST_TOKENS, N_FEAT, N_HEAD = 128, 10, 512, 4
    HEAD_DIM = N_FEAT // N_HEAD
    B = 2

    key = jax.random.PRNGKey(0)
    k_in, k_par = jax.random.split(key)
    ref_embeddings = jax.random.normal(k_in, (B, REF_DIM), jnp.float32)
    params = init_params(k_par, ref_dim=REF_DIM, gst_tokens=GST_TOKENS,
                         n_feat=N_FEAT, n_head=N_HEAD)

    # Parameter-only precompute happens once here ("model load").
    prepared = jax.block_until_ready(
        prepare_params(params, n_head=N_HEAD, head_dim=HEAD_DIM))

    out = style_token_layer_apply(ref_embeddings, prepared,
                                  n_head=N_HEAD, head_dim=HEAD_DIM)
    out = jax.block_until_ready(out)

    ref_out = reference_jax(ref_embeddings, params, n_head=N_HEAD, head_dim=HEAD_DIM)
    assert out.shape == (B, N_FEAT)
    # bf16 weights + approx reciprocal => relaxed tolerance vs the f32 reference.
    np.testing.assert_allclose(np.asarray(out), np.asarray(ref_out),
                               rtol=2e-2, atol=2e-2)

    print("KERNEL_OK")
</pallas_src>

<mosaic_0001>
module attributes {stable_mosaic.version = 11 : i64} {
  func.func @_stl_kernel(%arg0: i32, %arg1: memref<2x128xf32, #tpu.memory_space<vmem>>, %arg2: memref<512x10xbf16, #tpu.memory_space<vmem>>, %arg3: memref<10x512xbf16, #tpu.memory_space<vmem>>, %arg4: memref<128x512xbf16, #tpu.memory_space<vmem>>, %arg5: memref<1x512xf32, #tpu.memory_space<vmem>>, %arg6: memref<512x512xbf16, #tpu.memory_space<vmem>>, %arg7: memref<1x512xf32, #tpu.memory_space<vmem>>, %arg8: memref<2x512xf32, #tpu.memory_space<vmem>>, %arg9: memref<2x512xbf16, #tpu.memory_space<vmem>>) attributes {dimension_semantics = [#tpu.dimension_semantics<arbitrary>], iteration_bounds = array<i64: 1>, scalar_prefetch = 0 : i64, scratch_operands = 1 : i64, tpu.core_type = #tpu.core_type<tc>, window_params = [{pipeline_mode = #tpu.pipeline_mode<synchronous>, transform_indices = @transform_0, window_bounds = array<i64: 2, 128>}, {pipeline_mode = #tpu.pipeline_mode<synchronous>, transform_indices = @transform_1, window_bounds = array<i64: 512, 10>}, {pipeline_mode = #tpu.pipeline_mode<synchronous>, transform_indices = @transform_2, window_bounds = array<i64: 10, 512>}, {pipeline_mode = #tpu.pipeline_mode<synchronous>, transform_indices = @transform_3, window_bounds = array<i64: 128, 512>}, {pipeline_mode = #tpu.pipeline_mode<synchronous>, transform_indices = @transform_4, window_bounds = array<i64: 1, 512>}, {pipeline_mode = #tpu.pipeline_mode<synchronous>, transform_indices = @transform_5, window_bounds = array<i64: 512, 512>}, {pipeline_mode = #tpu.pipeline_mode<synchronous>, transform_indices = @transform_6, window_bounds = array<i64: 1, 512>}, {pipeline_mode = #tpu.pipeline_mode<synchronous>, transform_indices = @transform_7, window_bounds = array<i64: 2, 512>}]} {
    %c0 = arith.constant 0 : index
    %c0_0 = arith.constant 0 : index
    %0 = vector.load %arg1[%c0, %c0_0] : memref<2x128xf32, #tpu.memory_space<vmem>>, vector<2x128xf32>
    %1 = arith.truncf %0 : vector<2x128xf32> to vector<2x128xbf16>
    %c0_1 = arith.constant 0 : index
    %c0_2 = arith.constant 0 : index
    %2 = vector.load %arg4[%c0_1, %c0_2] : memref<128x512xbf16, #tpu.memory_space<vmem>>, vector<128x512xbf16>
    %cst = arith.constant dense<0.000000e+00> : vector<2x512xf32>
    %3 = tpu.matmul %1, %2, %cst {dimension_numbers = #tpu.dot_dimension_numbers<[1], [0], [0], [1], [0, 0, 1, 1], [], []>} : vector<2x128xbf16>, vector<128x512xbf16>, vector<2x512xf32> -> vector<2x512xf32>
    %c0_3 = arith.constant 0 : index
    %c0_4 = arith.constant 0 : index
    %4 = vector.load %arg5[%c0_3, %c0_4] : memref<1x512xf32, #tpu.memory_space<vmem>>, vector<1x512xf32>
    %5 = vector.broadcast %4 : vector<1x512xf32> to vector<2x512xf32>
    %6 = arith.addf %3, %5 : vector<2x512xf32>
    %7 = arith.truncf %6 : vector<2x512xf32> to vector<2x512xbf16>
    %8 = vector.extract_strided_slice %7 {offsets = [0, 0], sizes = [2, 128], strides = [1, 1]} : vector<2x512xbf16> to vector<2x128xbf16>
    %c0_5 = arith.constant 0 : index
    %c0_6 = arith.constant 0 : index
    %9 = vector.load %arg2[%c0_5, %c0_6] : memref<512x10xbf16, #tpu.memory_space<vmem>>, vector<128x10xbf16>
    %c0_7 = arith.constant 0 : index
    %c0_8 = arith.constant 0 : index
    %10 = vector.load %arg3[%c0_7, %c0_8] : memref<10x512xbf16, #tpu.memory_space<vmem>>, vector<10x128xbf16>
    %cst_9 = arith.constant dense<0.000000e+00> : vector<2x10xf32>
    %11 = tpu.matmul %8, %9, %cst_9 {dimension_numbers = #tpu.dot_dimension_numbers<[1], [0], [0], [1], [0, 0, 1, 1], [], []>} : vector<2x128xbf16>, vector<128x10xbf16>, vector<2x10xf32> -> vector<2x10xf32>
    %cst_10 = arith.constant dense<0xFF800000> : vector<2xf32>
    %12 = vector.multi_reduction <maximumf>, %11, %cst_10 [1] : vector<2x10xf32> to vector<2xf32>
    %13 = vector.shape_cast %12 : vector<2xf32> to vector<2x1xf32>
    %14 = vector.broadcast %13 : vector<2x1xf32> to vector<2x10xf32>
    %15 = arith.subf %11, %14 : vector<2x10xf32>
    %16 = math.exp %15 : vector<2x10xf32>
    %cst_11 = arith.constant dense<0.000000e+00> : vector<2xf32>
    %17 = vector.multi_reduction <add>, %16, %cst_11 [1] : vector<2x10xf32> to vector<2xf32>
    %18 = vector.shape_cast %17 : vector<2xf32> to vector<2x1xf32>
    %19 = tpu.reciprocal %18 {approx = true} : vector<2x1xf32> -> vector<2x1xf32>
    %20 = vector.broadcast %19 : vector<2x1xf32> to vector<2x10xf32>
    %21 = arith.mulf %16, %20 : vector<2x10xf32>
    %22 = arith.truncf %21 : vector<2x10xf32> to vector<2x10xbf16>
    %cst_12 = arith.constant dense<0.000000e+00> : vector<2x128xf32>
    %23 = tpu.matmul %22, %10, %cst_12 {dimension_numbers = #tpu.dot_dimension_numbers<[1], [0], [0], [1], [0, 0, 1, 1], [], []>} : vector<2x10xbf16>, vector<10x128xbf16>, vector<2x128xf32> -> vector<2x128xf32>
    %24 = arith.truncf %23 : vector<2x128xf32> to vector<2x128xbf16>
    %c0_13 = arith.constant 0 : index
    %c0_14 = arith.constant 0 : index
    %25 = vector.load %arg9[%c0_13, %c0_14] : memref<2x512xbf16, #tpu.memory_space<vmem>>, vector<2x128xbf16>
    tpu.vector_store %arg9[%c0_13, %c0_14], %24 {strides = array<i32>} : memref<2x512xbf16, #tpu.memory_space<vmem>>, vector<2x128xbf16>,
    %26 = vector.extract_strided_slice %7 {offsets = [0, 128], sizes = [2, 128], strides = [1, 1]} : vector<2x512xbf16> to vector<2x128xbf16>
    %c128 = arith.constant 128 : index
    %c0_15 = arith.constant 0 : index
    %27 = vector.load %arg2[%c128, %c0_15] : memref<512x10xbf16, #tpu.memory_space<vmem>>, vector<128x10xbf16>
    %c0_16 = arith.constant 0 : index
    %c128_17 = arith.constant 128 : index
    %28 = vector.load %arg3[%c0_16, %c128_17] : memref<10x512xbf16, #tpu.memory_space<vmem>>, vector<10x128xbf16>
    %cst_18 = arith.constant dense<0.000000e+00> : vector<2x10xf32>
    %29 = tpu.matmul %26, %27, %cst_18 {dimension_numbers = #tpu.dot_dimension_numbers<[1], [0], [0], [1], [0, 0, 1, 1], [], []>} : vector<2x128xbf16>, vector<128x10xbf16>, vector<2x10xf32> -> vector<2x10xf32>
    %cst_19 = arith.constant dense<0xFF800000> : vector<2xf32>
    %30 = vector.multi_reduction <maximumf>, %29, %cst_19 [1] : vector<2x10xf32> to vector<2xf32>
    %31 = vector.shape_cast %30 : vector<2xf32> to vector<2x1xf32>
    %32 = vector.broadcast %31 : vector<2x1xf32> to vector<2x10xf32>
    %33 = arith.subf %29, %32 : vector<2x10xf32>
    %34 = math.exp %33 : vector<2x10xf32>
    %cst_20 = arith.constant dense<0.000000e+00> : vector<2xf32>
    %35 = vector.multi_reduction <add>, %34, %cst_20 [1] : vector<2x10xf32> to vector<2xf32>
    %36 = vector.shape_cast %35 : vector<2xf32> to vector<2x1xf32>
    %37 = tpu.reciprocal %36 {approx = true} : vector<2x1xf32> -> vector<2x1xf32>
    %38 = vector.broadcast %37 : vector<2x1xf32> to vector<2x10xf32>
    %39 = arith.mulf %34, %38 : vector<2x10xf32>
    %40 = arith.truncf %39 : vector<2x10xf32> to vector<2x10xbf16>
    %cst_21 = arith.constant dense<0.000000e+00> : vector<2x128xf32>
    %41 = tpu.matmul %40, %28, %cst_21 {dimension_numbers = #tpu.dot_dimension_numbers<[1], [0], [0], [1], [0, 0, 1, 1], [], []>} : vector<2x10xbf16>, vector<10x128xbf16>, vector<2x128xf32> -> vector<2x128xf32>
    %42 = arith.truncf %41 : vector<2x128xf32> to vector<2x128xbf16>
    %c0_22 = arith.constant 0 : index
    %c128_23 = arith.constant 128 : index
    %43 = vector.load %arg9[%c0_22, %c128_23] : memref<2x512xbf16, #tpu.memory_space<vmem>>, vector<2x128xbf16>
    tpu.vector_store %arg9[%c0_22, %c128_23], %42 {strides = array<i32>} : memref<2x512xbf16, #tpu.memory_space<vmem>>, vector<2x128xbf16>,
    %44 = vector.extract_strided_slice %7 {offsets = [0, 256], sizes = [2, 128], strides = [1, 1]} : vector<2x512xbf16> to vector<2x128xbf16>
    %c256 = arith.constant 256 : index
    %c0_24 = arith.constant 0 : index
    %45 = vector.load %arg2[%c256, %c0_24] : memref<512x10xbf16, #tpu.memory_space<vmem>>, vector<128x10xbf16>
    %c0_25 = arith.constant 0 : index
    %c256_26 = arith.constant 256 : index
    %46 = vector.load %arg3[%c0_25, %c256_26] : memref<10x512xbf16, #tpu.memory_space<vmem>>, vector<10x128xbf16>
    %cst_27 = arith.constant dense<0.000000e+00> : vector<2x10xf32>
    %47 = tpu.matmul %44, %45, %cst_27 {dimension_numbers = #tpu.dot_dimension_numbers<[1], [0], [0], [1], [0, 0, 1, 1], [], []>} : vector<2x128xbf16>, vector<128x10xbf16>, vector<2x10xf32> -> vector<2x10xf32>
    %cst_28 = arith.constant dense<0xFF800000> : vector<2xf32>
    %48 = vector.multi_reduction <maximumf>, %47, %cst_28 [1] : vector<2x10xf32> to vector<2xf32>
    %49 = vector.shape_cast %48 : vector<2xf32> to vector<2x1xf32>
    %50 = vector.broadcast %49 : vector<2x1xf32> to vector<2x10xf32>
    %51 = arith.subf %47, %50 : vector<2x10xf32>
    %52 = math.exp %51 : vector<2x10xf32>
    %cst_29 = arith.constant dense<0.000000e+00> : vector<2xf32>
    %53 = vector.multi_reduction <add>, %52, %cst_29 [1] : vector<2x10xf32> to vector<2xf32>
    %54 = vector.shape_cast %53 : vector<2xf32> to vector<2x1xf32>
    %55 = tpu.reciprocal %54 {approx = true} : vector<2x1xf32> -> vector<2x1xf32>
    %56 = vector.broadcast %55 : vector<2x1xf32> to vector<2x10xf32>
    %57 = arith.mulf %52, %56 : vector<2x10xf32>
    %58 = arith.truncf %57 : vector<2x10xf32> to vector<2x10xbf16>
    %cst_30 = arith.constant dense<0.000000e+00> : vector<2x128xf32>
    %59 = tpu.matmul %58, %46, %cst_30 {dimension_numbers = #tpu.dot_dimension_numbers<[1], [0], [0], [1], [0, 0, 1, 1], [], []>} : vector<2x10xbf16>, vector<10x128xbf16>, vector<2x128xf32> -> vector<2x128xf32>
    %60 = arith.truncf %59 : vector<2x128xf32> to vector<2x128xbf16>
    %c0_31 = arith.constant 0 : index
    %c256_32 = arith.constant 256 : index
    %61 = vector.load %arg9[%c0_31, %c256_32] : memref<2x512xbf16, #tpu.memory_space<vmem>>, vector<2x128xbf16>
    tpu.vector_store %arg9[%c0_31, %c256_32], %60 {strides = array<i32>} : memref<2x512xbf16, #tpu.memory_space<vmem>>, vector<2x128xbf16>,
    %62 = vector.extract_strided_slice %7 {offsets = [0, 384], sizes = [2, 128], strides = [1, 1]} : vector<2x512xbf16> to vector<2x128xbf16>
    %c384 = arith.constant 384 : index
    %c0_33 = arith.constant 0 : index
    %63 = vector.load %arg2[%c384, %c0_33] : memref<512x10xbf16, #tpu.memory_space<vmem>>, vector<128x10xbf16>
    %c0_34 = arith.constant 0 : index
    %c384_35 = arith.constant 384 : index
    %64 = vector.load %arg3[%c0_34, %c384_35] : memref<10x512xbf16, #tpu.memory_space<vmem>>, vector<10x128xbf16>
    %cst_36 = arith.constant dense<0.000000e+00> : vector<2x10xf32>
    %65 = tpu.matmul %62, %63, %cst_36 {dimension_numbers = #tpu.dot_dimension_numbers<[1], [0], [0], [1], [0, 0, 1, 1], [], []>} : vector<2x128xbf16>, vector<128x10xbf16>, vector<2x10xf32> -> vector<2x10xf32>
    %cst_37 = arith.constant dense<0xFF800000> : vector<2xf32>
    %66 = vector.multi_reduction <maximumf>, %65, %cst_37 [1] : vector<2x10xf32> to vector<2xf32>
    %67 = vector.shape_cast %66 : vector<2xf32> to vector<2x1xf32>
    %68 = vector.broadcast %67 : vector<2x1xf32> to vector<2x10xf32>
    %69 = arith.subf %65, %68 : vector<2x10xf32>
    %70 = math.exp %69 : vector<2x10xf32>
    %cst_38 = arith.constant dense<0.000000e+00> : vector<2xf32>
    %71 = vector.multi_reduction <add>, %70, %cst_38 [1] : vector<2x10xf32> to vector<2xf32>
    %72 = vector.shape_cast %71 : vector<2xf32> to vector<2x1xf32>
    %73 = tpu.reciprocal %72 {approx = true} : vector<2x1xf32> -> vector<2x1xf32>
    %74 = vector.broadcast %73 : vector<2x1xf32> to vector<2x10xf32>
    %75 = arith.mulf %70, %74 : vector<2x10xf32>
    %76 = arith.truncf %75 : vector<2x10xf32> to vector<2x10xbf16>
    %cst_39 = arith.constant dense<0.000000e+00> : vector<2x128xf32>
    %77 = tpu.matmul %76, %64, %cst_39 {dimension_numbers = #tpu.dot_dimension_numbers<[1], [0], [0], [1], [0, 0, 1, 1], [], []>} : vector<2x10xbf16>, vector<10x128xbf16>, vector<2x128xf32> -> vector<2x128xf32>
    %78 = arith.truncf %77 : vector<2x128xf32> to vector<2x128xbf16>
    %c0_40 = arith.constant 0 : index
    %c384_41 = arith.constant 384 : index
    %79 = vector.load %arg9[%c0_40, %c384_41] : memref<2x512xbf16, #tpu.memory_space<vmem>>, vector<2x128xbf16>
    tpu.vector_store %arg9[%c0_40, %c384_41], %78 {strides = array<i32>} : memref<2x512xbf16, #tpu.memory_space<vmem>>, vector<2x128xbf16>,
    %c0_42 = arith.constant 0 : index
    %c0_43 = arith.constant 0 : index
    %80 = vector.load %arg9[%c0_42, %c0_43] : memref<2x512xbf16, #tpu.memory_space<vmem>>, vector<2x512xbf16>
    %c0_44 = arith.constant 0 : index
    %c0_45 = arith.constant 0 : index
    %81 = vector.load %arg6[%c0_44, %c0_45] : memref<512x512xbf16, #tpu.memory_space<vmem>>, vector<512x512xbf16>
    %cst_46 = arith.constant dense<0.000000e+00> : vector<2x512xf32>
    %82 = tpu.matmul %80, %81, %cst_46 {dimension_numbers = #tpu.dot_dimension_numbers<[1], [0], [0], [1], [0, 0, 1, 1], [], []>} : vector<2x512xbf16>, vector<512x512xbf16>, vector<2x512xf32> -> vector<2x512xf32>
    %c0_47 = arith.constant 0 : index
    %c0_48 = arith.constant 0 : index
    %83 = vector.load %arg7[%c0_47, %c0_48] : memref<1x512xf32, #tpu.memory_space<vmem>>, vector<1x512xf32>
    %84 = vector.broadcast %83 : vector<1x512xf32> to vector<2x512xf32>
    %85 = arith.addf %82, %84 : vector<2x512xf32>
    %c0_49 = arith.constant 0 : index
    %c0_50 = arith.constant 0 : index
    %86 = vector.load %arg8[%c0_49, %c0_50] : memref<2x512xf32, #tpu.memory_space<vmem>>, vector<2x512xf32>
    tpu.vector_store %arg8[%c0_49, %c0_50], %85 {strides = array<i32>} : memref<2x512xf32, #tpu.memory_space<vmem>>, vector<2x512xf32>,
    return
  }
  func.func @transform_0(%arg0: i32) -> (i32, i32) {
    %c0_i32 = arith.constant 0 : i32
    %c0_i32_0 = arith.constant 0 : i32
    %c0_i32_1 = arith.constant 0 : i32
    return %c0_i32, %c0_i32_0 : i32, i32
  }
  func.func @transform_1(%arg0: i32) -> (i32, i32) {
    %c0_i32 = arith.constant 0 : i32
    %c0_i32_0 = arith.constant 0 : i32
    %c0_i32_1 = arith.constant 0 : i32
    return %c0_i32, %c0_i32_0 : i32, i32
  }
  func.func @transform_2(%arg0: i32) -> (i32, i32) {
    %c0_i32 = arith.constant 0 : i32
    %c0_i32_0 = arith.constant 0 : i32
    %c0_i32_1 = arith.constant 0 : i32
    return %c0_i32, %c0_i32_0 : i32, i32
  }
  func.func @transform_3(%arg0: i32) -> (i32, i32) {
    %c0_i32 = arith.constant 0 : i32
    %c0_i32_0 = arith.constant 0 : i32
    %c0_i32_1 = arith.constant 0 : i32
    return %c0_i32, %c0_i32_0 : i32, i32
  }
  func.func @transform_4(%arg0: i32) -> (i32, i32) {
    %c0_i32 = arith.constant 0 : i32
    %c0_i32_0 = arith.constant 0 : i32
    %c0_i32_1 = arith.constant 0 : i32
    return %c0_i32, %c0_i32_0 : i32, i32
  }
  func.func @transform_5(%arg0: i32) -> (i32, i32) {
    %c0_i32 = arith.constant 0 : i32
    %c0_i32_0 = arith.constant 0 : i32
    %c0_i32_1 = arith.constant 0 : i32
    return %c0_i32, %c0_i32_0 : i32, i32
  }
  func.func @transform_6(%arg0: i32) -> (i32, i32) {
    %c0_i32 = arith.constant 0 : i32
    %c0_i32_0 = arith.constant 0 : i32
    %c0_i32_1 = arith.constant 0 : i32
    return %c0_i32, %c0_i32_0 : i32, i32
  }
  func.func @transform_7(%arg0: i32) -> (i32, i32) {
    %c0_i32 = arith.constant 0 : i32
    %c0_i32_0 = arith.constant 0 : i32
    %c0_i32_1 = arith.constant 0 : i32
    return %c0_i32, %c0_i32_0 : i32, i32
  }
}

</mosaic_0001>

<llo_original>
// kernel: tpu_custom_call.1
$region0: #{tpu_custom_call.1}
  #allocation0 [shape = 'u32[]', space=smem, size = 0x4, offset = 0x4, fixed_abs, tag = 'smem constant byte address 0x4 - core index']
  #allocation1 [shape = 'u32[144,128]{1,0:T(1,128)}', space=vmem, size = 0x12000, scoped, tag = 'internal scratch']
  #allocation2 [shape = 'bf16[2,512]{1,0:T(2,128)(2,1)}', space=vmem, size = 0x800, scoped, tag = 'scratch operand']
  %s0 = inlined_call_operand.vmem [shape: f32[2,128], index: 0, kind: input, shape index: {}]
  %s1 = inlined_call_operand.vmem [shape: bf16[512,10], index: 1, kind: input, shape index: {}]
  %s2 = inlined_call_operand.vmem [shape: bf16[10,512], index: 2, kind: input, shape index: {}]
  %s3 = inlined_call_operand.vmem [shape: bf16[128,512], index: 3, kind: input, shape index: {}]
  %s4 = inlined_call_operand.vmem [shape: f32[1,512], index: 4, kind: input, shape index: {}]
  %s5 = inlined_call_operand.hbm [shape: bf16[512,512], index: 5, kind: input, shape index: {}]
  %s6 = inlined_call_operand.vmem [shape: f32[1,512], index: 6, kind: input, shape index: {}]
  %s7 = inlined_call_operand.hbm [shape: f32[2,512], index: 7, kind: output, shape index: {}]
  %s8 = sld [smem:[#allocation0]]
  $region42: #{tpu_custom_call.1} parent=0
    _
  %s10 = ssub.s32 1, %s8
  %s11 = scalar_select 0, %s10, %s8
  $region1: #{tpu_custom_call.1} parent=0
    #allocation3 [shape = 'u8[524288]{0}', space=vmem, size = 0x80000, scoped, tag = 'input window, operand 5, single buffered']
    #allocation4 [shape = 's32[1]{0}', space=sflag, size = 0x4, scoped, tag = 'scoped memory for tpu_custom_call.1']
    #allocation5 [shape = 's32[1]{0}', space=sflag, size = 0x4, scoped, tag = 'scoped memory for tpu_custom_call.1']
    #allocation6 [shape = 'u8[4096]{0}', space=vmem, size = 0x1000, scoped, tag = 'output window, operand 0, single buffered']
    %12 = vsyncpa [#allocation4], 0
    %13 = vsyncpa [#allocation5], 0
    // Predicated region
    $region2: #{tpu_custom_call.1} parent=1 // pred_check
      _
    $region3: #{tpu_custom_call.1} parent=1 // pred_check_branch
      %15 = sbr.rel (0) target = $region5
    $region4: #{tpu_custom_call.1} parent=1 // pred_region
      _
    $region5: #{tpu_custom_call.1} parent=1 // pred_fallthru
      _
    // Predicated region
    $region6: #{tpu_custom_call.1} parent=1 // pred_check
      _
    $region7: #{tpu_custom_call.1} parent=1 // pred_check_branch
      %17 = sbr.rel (0) target = $region9
    $region8: #{tpu_custom_call.1} parent=1 // pred_region
      _
    $region9: #{tpu_custom_call.1} parent=1 // pred_fallthru
      _
    // Predicated region
    $region10: #{tpu_custom_call.1} parent=1 // pred_check
      _
    $region11: #{tpu_custom_call.1} parent=1 // pred_check_branch
      %19 = sbr.rel (0) target = $region13
    $region12: #{tpu_custom_call.1} parent=1 // pred_region
      _
    $region13: #{tpu_custom_call.1} parent=1 // pred_fallthru
      _
    // Predicated region
    $region14: #{tpu_custom_call.1} parent=1 // pred_check
      _
    $region15: #{tpu_custom_call.1} parent=1 // pred_check_branch
      %21 = sbr.rel (0) target = $region17
    $region16: #{tpu_custom_call.1} parent=1 // pred_region
      _
    $region17: #{tpu_custom_call.1} parent=1 // pred_fallthru
      _
    // Predicated region
    $region18: #{tpu_custom_call.1} parent=1 // pred_check
      _
    $region19: #{tpu_custom_call.1} parent=1 // pred_check_branch
      %23 = sbr.rel (0) target = $region21
    $region20: #{tpu_custom_call.1} parent=1 // pred_region
      _
    $region21: #{tpu_custom_call.1} parent=1 // pred_fallthru
      _
    // Predicated region
    $region22: #{tpu_custom_call.1} parent=1 // pred_check
      _
    $region23: #{tpu_custom_call.1} parent=1 // pred_check_branch
      %25 = sbr.rel (0) target = $region25
    $region24: #{tpu_custom_call.1} parent=1 // pred_region
      %s27 = ssub.s32 16384, 16384
      %28 = vsyncadd [#allocation4], %s27
      %s29 = sshll.u32 [#allocation3], 4
      %s30 = int_to_ptr.vmem [resolvable:$true] %s29
      %35 = dma.hbm_to_vmem [thread:$0]  %s5, 16384, %s30, [#allocation4], 256, 256, 16
    $region25: #{tpu_custom_call.1} parent=1 // pred_fallthru
      _
    // Predicated region
    $region26: #{tpu_custom_call.1} parent=1 // pred_check
      _
    $region27: #{tpu_custom_call.1} parent=1 // pred_check_branch
      %37 = sbr.rel (0) target = $region29
    $region28: #{tpu_custom_call.1} parent=1 // pred_region
      _
    $region29: #{tpu_custom_call.1} parent=1 // pred_fallthru
      _
    // Predicated region
    $region30: #{tpu_custom_call.1} parent=1 // pred_check
      _
    $region31: #{tpu_custom_call.1} parent=1 // pred_check_branch
      %39 = sbr.rel (0) target = $region33
    $region32: #{tpu_custom_call.1} parent=1 // pred_region
      %40 = dma.done [#allocation4], 16384
    $region33: #{tpu_custom_call.1} parent=1 // pred_fallthru
      _
    %v42 = vld [vmem:[%s0] sm:$0x3]
    %v43 = vpack.c.bf16 %v42, %v42
    %v44 = vld [vmem:[%s3] sm:$0xff]
    %v45 = vld [vmem:[%s3 + $0x8] sm:$0xff]
    %v46 = vld [vmem:[%s3 + $0x10] sm:$0xff]
    %v47 = vld [vmem:[%s3 + $0x18] sm:$0xff]
    %v48 = vld [vmem:[%s3 + $0x20] sm:$0xff]
    %v49 = vld [vmem:[%s3 + $0x28] sm:$0xff]
    %v50 = vld [vmem:[%s3 + $0x30] sm:$0xff]
    %v51 = vld [vmem:[%s3 + $0x38] sm:$0xff]
    %v52 = vld [vmem:[%s3 + $0x40] sm:$0xff]
    %v53 = vld [vmem:[%s3 + $0x48] sm:$0xff]
    %v54 = vld [vmem:[%s3 + $0x50] sm:$0xff]
    %v55 = vld [vmem:[%s3 + $0x58] sm:$0xff]
    %v56 = vld [vmem:[%s3 + $0x60] sm:$0xff]
    %v57 = vld [vmem:[%s3 + $0x68] sm:$0xff]
    %v58 = vld [vmem:[%s3 + $0x70] sm:$0xff]
    %v59 = vld [vmem:[%s3 + $0x78] sm:$0xff]
    %v60 = vld [vmem:[%s3 + $0x80] sm:$0xff]
    %v61 = vld [vmem:[%s3 + $0x88] sm:$0xff]
    %v62 = vld [vmem:[%s3 + $0x90] sm:$0xff]
    %v63 = vld [vmem:[%s3 + $0x98] sm:$0xff]
    %v64 = vld [vmem:[%s3 + $0xa0] sm:$0xff]
    %v65 = vld [vmem:[%s3 + $0xa8] sm:$0xff]
    %v66 = vld [vmem:[%s3 + $0xb0] sm:$0xff]
    %v67 = vld [vmem:[%s3 + $0xb8] sm:$0xff]
    %v68 = vld [vmem:[%s3 + $0xc0] sm:$0xff]
    %v69 = vld [vmem:[%s3 + $0xc8] sm:$0xff]
    %v70 = vld [vmem:[%s3 + $0xd0] sm:$0xff]
    %v71 = vld [vmem:[%s3 + $0xd8] sm:$0xff]
    %v72 = vld [vmem:[%s3 + $0xe0] sm:$0xff]
    %v73 = vld [vmem:[%s3 + $0xe8] sm:$0xff]
    %v74 = vld [vmem:[%s3 + $0xf0] sm:$0xff]
    %v75 = vld [vmem:[%s3 + $0xf8] sm:$0xff]
    %v76 = vld [vmem:[%s4] sm:$0xf]
    %v78 = vlaneseq
    %v79 = vshrl.u32 %v78, 7
    %v80 = vsub.s32 0, %v79
    %v81 = vrot.slane %v76, %v80
    %v82 = vlaneseq
    %v83 = vshrl.u32 %v82, 7
    %v84 = vsub.s32 1, %v83
    %v85 = vrot.slane %v76, %v84
    %v86 = vlaneseq
    %v87 = vshrl.u32 %v86, 7
    %v88 = vsub.s32 2, %v87
    %v89 = vrot.slane %v76, %v88
    %v90 = vlaneseq
    %v91 = vshrl.u32 %v90, 7
    %v92 = vsub.s32 3, %v91
    %v93 = vrot.slane %v76, %v92
    %v130 = vunpack.c.l.b16 %v44
    %v131 = vunpack.c.h.b16 %v44
    %v132 = vunpack.c.l.b16 %v45
    %v133 = vunpack.c.h.b16 %v45
    %v134 = vunpack.c.l.b16 %v46
    %v135 = vunpack.c.h.b16 %v46
    %v136 = vunpack.c.l.b16 %v47
    %v137 = vunpack.c.h.b16 %v47
    %v138 = vunpack.c.l.b16 %v48
    %v139 = vunpack.c.h.b16 %v48
    %v140 = vunpack.c.l.b16 %v49
    %v141 = vunpack.c.h.b16 %v49
    %v142 = vunpack.c.l.b16 %v50
    %v143 = vunpack.c.h.b16 %v50
    %v144 = vunpack.c.l.b16 %v51
    %v145 = vunpack.c.h.b16 %v51
    %v146 = vunpack.c.l.b16 %v52
    %v147 = vunpack.c.h.b16 %v52
    %v148 = vunpack.c.l.b16 %v53
    %v149 = vunpack.c.h.b16 %v53
    %v150 = vunpack.c.l.b16 %v54
    %v151 = vunpack.c.h.b16 %v54
    %v152 = vunpack.c.l.b16 %v55
    %v153 = vunpack.c.h.b16 %v55
    %v154 = vunpack.c.l.b16 %v56
    %v155 = vunpack.c.h.b16 %v56
    %v156 = vunpack.c.l.b16 %v57
    %v157 = vunpack.c.h.b16 %v57
    %v158 = vunpack.c.l.b16 %v58
    %v159 = vunpack.c.h.b16 %v58
    %v160 = vunpack.c.l.b16 %v59
    %v161 = vunpack.c.h.b16 %v59
    %v162 = vunpack.c.l.b16 %v60
    %v163 = vunpack.c.h.b16 %v60
    %v164 = vunpack.c.l.b16 %v61
    %v165 = vunpack.c.h.b16 %v61
    %v166 = vunpack.c.l.b16 %v62
    %v167 = vunpack.c.h.b16 %v62
    %v168 = vunpack.c.l.b16 %v63
    %v169 = vunpack.c.h.b16 %v63
    %v170 = vunpack.c.l.b16 %v64
    %v171 = vunpack.c.h.b16 %v64
    %v172 = vunpack.c.l.b16 %v65
    %v173 = vunpack.c.h.b16 %v65
    %v174 = vunpack.c.l.b16 %v66
    %v175 = vunpack.c.h.b16 %v66
    %v176 = vunpack.c.l.b16 %v67
    %v177 = vunpack.c.h.b16 %v67
    %v178 = vunpack.c.l.b16 %v68
    %v179 = vunpack.c.h.b16 %v68
    %v180 = vunpack.c.l.b16 %v69
    %v181 = vunpack.c.h.b16 %v69
    %v182 = vunpack.c.l.b16 %v70
    %v183 = vunpack.c.h.b16 %v70
    %v184 = vunpack.c.l.b16 %v71
    %v185 = vunpack.c.h.b16 %v71
    %v186 = vunpack.c.l.b16 %v72
    %v187 = vunpack.c.h.b16 %v72
    %v188 = vunpack.c.l.b16 %v73
    %v189 = vunpack.c.h.b16 %v73
    %v190 = vunpack.c.l.b16 %v74
    %v191 = vunpack.c.h.b16 %v74
    %v192 = vunpack.c.l.b16 %v75
    %v193 = vunpack.c.h.b16 %v75
    %v194 = vpack.c.b16 %v134, %v130
    %v195 = vpack.c.b16 %v135, %v131
    %v196 = vpack.c.b16 %v136, %v132
    %v197 = vpack.c.b16 %v137, %v133
    %v198 = vpack.c.b16 %v142, %v138
    %v199 = vpack.c.b16 %v143, %v139
    %v200 = vpack.c.b16 %v144, %v140
    %v201 = vpack.c.b16 %v145, %v141
    %v202 = vpack.c.b16 %v150, %v146
    %v203 = vpack.c.b16 %v151, %v147
    %v204 = vpack.c.b16 %v152, %v148
    %v205 = vpack.c.b16 %v153, %v149
    %v206 = vpack.c.b16 %v158, %v154
    %v207 = vpack.c.b16 %v159, %v155
    %v208 = vpack.c.b16 %v160, %v156
    %v209 = vpack.c.b16 %v161, %v157
    %v210 = vpack.c.b16 %v166, %v162
    %v211 = vpack.c.b16 %v167, %v163
    %v212 = vpack.c.b16 %v168, %v164
    %v213 = vpack.c.b16 %v169, %v165
    %v214 = vpack.c.b16 %v174, %v170
    %v215 = vpack.c.b16 %v175, %v171
    %v216 = vpack.c.b16 %v176, %v172
    %v217 = vpack.c.b16 %v177, %v173
    %v218 = vpack.c.b16 %v182, %v178
    %v219 = vpack.c.b16 %v183, %v179
    %v220 = vpack.c.b16 %v184, %v180
    %v221 = vpack.c.b16 %v185, %v181
    %v222 = vpack.c.b16 %v190, %v186
    %v223 = vpack.c.b16 %v191, %v187
    %v224 = vpack.c.b16 %v192, %v188
    %v225 = vpack.c.b16 %v193, %v189
    %258 = vmatprep.subr.bf16.mxu0 %v195
    %259 = vmatpush1.bf16.msra.mxu0 %v194
    %260 = vmatprep.subr.bf16.mxu0 %v199
    %261 = vmatpush1.bf16.msra.mxu0 %v198
    %262 = vmatprep.subr.bf16.mxu0 %v203
    %263 = vmatpush1.bf16.msra.mxu0 %v202
    %264 = vmatprep.subr.bf16.mxu0 %v207
    %265 = vmatpush1.bf16.msra.mxu0 %v206
    %266 = vmatprep.subr.bf16.mxu0 %v211
    %267 = vmatpush1.bf16.msra.mxu0 %v210
    %268 = vmatprep.subr.bf16.mxu0 %v215
    %269 = vmatpush1.bf16.msra.mxu0 %v214
    %270 = vmatprep.subr.bf16.mxu0 %v219
    %271 = vmatpush1.bf16.msra.mxu0 %v218
    %272 = vmatprep.subr.bf16.mxu0 %v223
    %273 = vmatpush1.bf16.msra.mxu0 %v222
    %274 = vmatprep.subr.bf16.mxu0 0
    %275 = vmatpush1.bf16.msra.mxu0 0
    %276 = vmatprep.subr.bf16.mxu0 0
    %277 = vmatpush1.bf16.msra.mxu0 0
    %278 = vmatprep.subr.bf16.mxu0 0
    %279 = vmatpush1.bf16.msra.mxu0 0
    %280 = vmatprep.subr.bf16.mxu0 0
    %281 = vmatpush1.bf16.msra.mxu0 0
    %282 = vmatprep.subr.bf16.mxu0 0
    %283 = vmatpush1.bf16.msra.mxu0 0
    %284 = vmatprep.subr.bf16.mxu0 0
    %285 = vmatpush1.bf16.msra.mxu0 0
    %286 = vmatprep.subr.bf16.mxu0 0
    %287 = vmatpush1.bf16.msra.mxu0 0
    %288 = vmatprep.subr.bf16.mxu0 0
    %289 = vmatpush1.bf16.msra.mxu0 0
    %290 = vmatprep.mubr.bf16.mxu0 0
    %291 = vmatmul.mubr.bf16.gmra.mrb[0].mxu0 %v43
    %v292 = vpop.f32.mrb[0].mxu0
    %v293 = vadd.f32 %v81, %v292
    %v294 = vpop.f32.mrb[0].mxu0
    %v295 = vadd.f32 %v85, %v294
    %v296 = vpop.f32.mrb[0].mxu0
    %v297 = vpop.f32.mrb[0].mxu0
    %298 = vdwg.mxu0
    %299 = vmatprep.subr.bf16.mxu0 %v197
    %300 = vmatpush1.bf16.msra.mxu0 %v196
    %301 = vmatprep.subr.bf16.mxu0 %v201
    %302 = vmatpush1.bf16.msra.mxu0 %v200
    %303 = vmatprep.subr.bf16.mxu0 %v205
    %304 = vmatpush1.bf16.msra.mxu0 %v204
    %305 = vmatprep.subr.bf16.mxu0 %v209
    %306 = vmatpush1.bf16.msra.mxu0 %v208
    %307 = vmatprep.subr.bf16.mxu0 %v213
    %308 = vmatpush1.bf16.msra.mxu0 %v212
    %309 = vmatprep.subr.bf16.mxu0 %v217
    %310 = vmatpush1.bf16.msra.mxu0 %v216
    %311 = vmatprep.subr.bf16.mxu0 %v221
    %312 = vmatpush1.bf16.msra.mxu0 %v220
    %313 = vmatprep.subr.bf16.mxu0 %v225
    %314 = vmatpush1.bf16.msra.mxu0 %v224
    %315 = vmatprep.subr.bf16.mxu0 0
    %316 = vmatpush1.bf16.msra.mxu0 0
    %317 = vmatprep.subr.bf16.mxu0 0
    %318 = vmatpush1.bf16.msra.mxu0 0
    %319 = vmatprep.subr.bf16.mxu0 0
    %320 = vmatpush1.bf16.msra.mxu0 0
    %321 = vmatprep.subr.bf16.mxu0 0
    %322 = vmatpush1.bf16.msra.mxu0 0
    %323 = vmatprep.subr.bf16.mxu0 0
    %324 = vmatpush1.bf16.msra.mxu0 0
    %325 = vmatprep.subr.bf16.mxu0 0
    %326 = vmatpush1.bf16.msra.mxu0 0
    %327 = vmatprep.subr.bf16.mxu0 0
    %328 = vmatpush1.bf16.msra.mxu0 0
    %329 = vmatprep.subr.bf16.mxu0 0
    %330 = vmatpush1.bf16.msra.mxu0 0
    %331 = vmatprep.mubr.bf16.mxu0 0
    %332 = vmatmul.mubr.bf16.gmra.mrb[0].mxu0 %v43
    %v333 = vpop.f32.mrb[0].mxu0
    %v334 = vadd.f32 %v89, %v333
    %v335 = vpop.f32.mrb[0].mxu0
    %v336 = vadd.f32 %v93, %v335
    %v337 = vpop.f32.mrb[0].mxu0
    %v338 = vpop.f32.mrb[0].mxu0
    %339 = vdwg.mxu0
    %v340 = vpack.c.bf16 %v293, %v293
    %v341 = vpack.c.bf16 %v295, %v295
    %v342 = vpack.c.bf16 %v334, %v334
    %v343 = vpack.c.bf16 %v336, %v336
    %v344 = vld [vmem:[%s1] sm:$0xf]
    %v345 = vld [vmem:[%s1 + $0x4] sm:$0xf]
    %v346 = vld [vmem:[%s1 + $0x8] sm:$0xf]
    %v347 = vld [vmem:[%s1 + $0xc] sm:$0xf]
    %v348 = vld [vmem:[%s1 + $0x10] sm:$0xf]
    %v349 = vld [vmem:[%s1 + $0x14] sm:$0xf]
    %v350 = vld [vmem:[%s1 + $0x18] sm:$0xf]
    %v351 = vld [vmem:[%s1 + $0x1c] sm:$0xf]
    %v352 = vld [vmem:[%s1 + $0x20] sm:$0xf]
    %v353 = vld [vmem:[%s1 + $0x24] sm:$0xf]
    %v354 = vld [vmem:[%s1 + $0x28] sm:$0xf]
    %v355 = vld [vmem:[%s1 + $0x2c] sm:$0xf]
    %v356 = vld [vmem:[%s1 + $0x30] sm:$0xf]
    %v357 = vld [vmem:[%s1 + $0x34] sm:$0xf]
    %v358 = vld [vmem:[%s1 + $0x38] sm:$0xf]
    %v359 = vld [vmem:[%s1 + $0x3c] sm:$0xf]
    %v360 = vld [vmem:[%s2] sm:$0xf]
    %v361 = vld [vmem:[%s2 + $0x10] sm:$0x1]
    %v378 = vunpack.c.l.b16 %v344
    %v379 = vunpack.c.l.b16 %v345
    %v380 = vunpack.c.l.b16 %v346
    %v381 = vunpack.c.l.b16 %v347
    %v382 = vunpack.c.l.b16 %v348
    %v383 = vunpack.c.l.b16 %v349
    %v384 = vunpack.c.l.b16 %v350
    %v385 = vunpack.c.l.b16 %v351
    %v386 = vunpack.c.l.b16 %v352
    %v387 = vunpack.c.l.b16 %v353
    %v388 = vunpack.c.l.b16 %v354
    %v389 = vunpack.c.l.b16 %v355
    %v390 = vunpack.c.l.b16 %v356
    %v391 = vunpack.c.l.b16 %v357
    %v392 = vunpack.c.l.b16 %v358
    %v393 = vunpack.c.l.b16 %v359
    %v394 = vpack.c.b16 %v379, %v378
    %v395 = vpack.c.b16 %v381, %v380
    %v396 = vpack.c.b16 %v383, %v382
    %v397 = vpack.c.b16 %v385, %v384
    %v398 = vpack.c.b16 %v387, %v386
    %v399 = vpack.c.b16 %v389, %v388
    %v400 = vpack.c.b16 %v391, %v390
    %v401 = vpack.c.b16 %v393, %v392
    %410 = vmatprep.subr.bf16.mxu0 0
    %411 = vmatpush1.bf16.msra.mxu0 %v394
    %412 = vmatprep.subr.bf16.mxu0 0
    %413 = vmatpush1.bf16.msra.mxu0 %v395
    %414 = vmatprep.subr.bf16.mxu0 0
    %415 = vmatpush1.bf16.msra.mxu0 %v396
    %416 = vmatprep.subr.bf16.mxu0 0
    %417 = vmatpush1.bf16.msra.mxu0 %v397
    %418 = vmatprep.subr.bf16.mxu0 0
    %419 = vmatpush1.bf16.msra.mxu0 %v398
    %420 = vmatprep.subr.bf16.mxu0 0
    %421 = vmatpush1.bf16.msra.mxu0 %v399
    %422 = vmatprep.subr.bf16.mxu0 0
    %423 = vmatpush1.bf16.msra.mxu0 %v400
    %424 = vmatprep.subr.bf16.mxu0 0
    %425 = vmatpush1.bf16.msra.mxu0 %v401
    %426 = vmatprep.subr.bf16.mxu0 0
    %427 = vmatpush1.bf16.msra.mxu0 0
    %428 = vmatprep.subr.bf16.mxu0 0
    %429 = vmatpush1.bf16.msra.mxu0 0
    %430 = vmatprep.subr.bf16.mxu0 0
    %431 = vmatpush1.bf16.msra.mxu0 0
    %432 = vmatprep.subr.bf16.mxu0 0
    %433 = vmatpush1.bf16.msra.mxu0 0
    %434 = vmatprep.subr.bf16.mxu0 0
    %435 = vmatpush1.bf16.msra.mxu0 0
    %436 = vmatprep.subr.bf16.mxu0 0
    %437 = vmatpush1.bf16.msra.mxu0 0
    %438 = vmatprep.subr.bf16.mxu0 0
    %439 = vmatpush1.bf16.msra.mxu0 0
    %440 = vmatprep.subr.bf16.mxu0 0
    %441 = vmatpush1.bf16.msra.mxu0 0
    %442 = vmatprep.mubr.bf16.mxu0 0
    %443 = vmatmul.mubr.bf16.gmra.mrb[0].mxu0 %v340
    %v444 = vpop.f32.mrb[0].mxu0
    %v445 = vadd.f32 0.0, %v444
    %v446 = vpop.f32.mrb[0].mxu0
    %v447 = vpop.f32.mrb[0].mxu0
    %v448 = vpop.f32.mrb[0].mxu0
    %449 = vdwg.mxu0
    %vm450 = vcmask 74752
    %v451 = vsel %vm450, %v445, -inf
    %452 = vmax.xlane.f32.xlu0 %v451
    %v453 = vpop.xlane.xlu0 %452
    %v454 = vsub.f32 %v445, %v453
    %v455 = vmul.f32 %v454, 1.442695
    %v456 = vpow.pop %v455
    %v457 = vsel %vm450, %v456, 0.0
    %458 = vadd.xlane.f32.xlu0 %v457
    %v459 = vpop.xlane.xlu0 %458
    %v460 = vrcp.pop %v459
    %v461 = vmul.f32 %v456, %v460
    %v462 = vpack.c.bf16 %v461, %v461
    %v465 = vunpack.c.l.b16 %v360
    %v466 = vunpack.c.l.b16 %v361
    %v467 = vpack.c.b16 %v466, %v465
    %vm468 = vcmask 80896
    %v470 = vsel %vm468, %v462, 0
    %vm472 = vcmask 1044480
    %v474 = vsel %vm472, %v467, 0
    %476 = vmatprep.subr.bf16.mxu0 0
    %477 = vmatpush1.bf16.msra.mxu0 %v474
    %478 = vmatprep.subr.bf16.mxu0 0
    %479 = vmatpush1.bf16.msra.mxu0 0
    %480 = vmatprep.subr.bf16.mxu0 0
    %481 = vmatpush1.bf16.msra.mxu0 0
    %482 = vmatprep.subr.bf16.mxu0 0
    %483 = vmatpush1.bf16.msra.mxu0 0
    %484 = vmatprep.subr.bf16.mxu0 0
    %485 = vmatpush1.bf16.msra.mxu0 0
    %486 = vmatprep.subr.bf16.mxu0 0
    %487 = vmatpush1.bf16.msra.mxu0 0
    %488 = vmatprep.subr.bf16.mxu0 0
    %489 = vmatpush1.bf16.msra.mxu0 0
    %490 = vmatprep.subr.bf16.mxu0 0
    %491 = vmatpush1.bf16.msra.mxu0 0
    %492 = vmatprep.subr.bf16.mxu0 0
    %493 = vmatpush1.bf16.msra.mxu0 0
    %494 = vmatprep.subr.bf16.mxu0 0
    %495 = vmatpush1.bf16.msra.mxu0 0
    %496 = vmatprep.subr.bf16.mxu0 0
    %497 = vmatpush1.bf16.msra.mxu0 0
    %498 = vmatprep.subr.bf16.mxu0 0
    %499 = vmatpush1.bf16.msra.mxu0 0
    %500 = vmatprep.subr.bf16.mxu0 0
    %501 = vmatpush1.bf16.msra.mxu0 0
    %502 = vmatprep.subr.bf16.mxu0 0
    %503 = vmatpush1.bf16.msra.mxu0 0
    %504 = vmatprep.subr.bf16.mxu0 0
    %505 = vmatpush1.bf16.msra.mxu0 0
    %506 = vmatprep.subr.bf16.mxu0 0
    %507 = vmatpush1.bf16.msra.mxu0 0
    %508 = vmatprep.mubr.bf16.mxu0 0
    %509 = vmatmul.mubr.bf16.gmra.mrb[0].mxu0 %v470
    %v510 = vpop.f32.mrb[0].mxu0
    %v511 = vadd.f32 0.0, %v510
    %v512 = vpop.f32.mrb[0].mxu0
    %v513 = vpop.f32.mrb[0].mxu0
    %v514 = vpop.f32.mrb[0].mxu0
    %515 = vdwg.mxu0
    %v516 = vpack.c.bf16 %v511, %v511
    %517 = vst [vmem:[#allocation2] sm:$0x1] %v516
    %v518 = vld [vmem:[%s1 + $0x40] sm:$0xf]
    %v519 = vld [vmem:[%s1 + $0x44] sm:$0xf]
    %v520 = vld [vmem:[%s1 + $0x48] sm:$0xf]
    %v521 = vld [vmem:[%s1 + $0x4c] sm:$0xf]
    %v522 = vld [vmem:[%s1 + $0x50] sm:$0xf]
    %v523 = vld [vmem:[%s1 + $0x54] sm:$0xf]
    %v524 = vld [vmem:[%s1 + $0x58] sm:$0xf]
    %v525 = vld [vmem:[%s1 + $0x5c] sm:$0xf]
    %v526 = vld [vmem:[%s1 + $0x60] sm:$0xf]
    %v527 = vld [vmem:[%s1 + $0x64] sm:$0xf]
    %v528 = vld [vmem:[%s1 + $0x68] sm:$0xf]
    %v529 = vld [vmem:[%s1 + $0x6c] sm:$0xf]
    %v530 = vld [vmem:[%s1 + $0x70] sm:$0xf]
    %v531 = vld [vmem:[%s1 + $0x74] sm:$0xf]
    %v532 = vld [vmem:[%s1 + $0x78] sm:$0xf]
    %v533 = vld [vmem:[%s1 + $0x7c] sm:$0xf]
    %v534 = vld [vmem:[%s2 + $0x4] sm:$0xf]
    %v535 = vld [vmem:[%s2 + $0x14] sm:$0x1]
    %v552 = vunpack.c.l.b16 %v518
    %v553 = vunpack.c.l.b16 %v519
    %v554 = vunpack.c.l.b16 %v520
    %v555 = vunpack.c.l.b16 %v521
    %v556 = vunpack.c.l.b16 %v522
    %v557 = vunpack.c.l.b16 %v523
    %v558 = vunpack.c.l.b16 %v524
    %v559 = vunpack.c.l.b16 %v525
    %v560 = vunpack.c.l.b16 %v526
    %v561 = vunpack.c.l.b16 %v527
    %v562 = vunpack.c.l.b16 %v528
    %v563 = vunpack.c.l.b16 %v529
    %v564 = vunpack.c.l.b16 %v530
    %v565 = vunpack.c.l.b16 %v531
    %v566 = vunpack.c.l.b16 %v532
    %v567 = vunpack.c.l.b16 %v533
    %v568 = vpack.c.b16 %v553, %v552
    %v569 = vpack.c.b16 %v555, %v554
    %v570 = vpack.c.b16 %v557, %v556
    %v571 = vpack.c.b16 %v559, %v558
    %v572 = vpack.c.b16 %v561, %v560
    %v573 = vpack.c.b16 %v563, %v562
    %v574 = vpack.c.b16 %v565, %v564
    %v575 = vpack.c.b16 %v567, %v566
    %584 = vmatprep.subr.bf16.mxu0 0
    %585 = vmatpush1.bf16.msra.mxu0 %v568
    %586 = vmatprep.subr.bf16.mxu0 0
    %587 = vmatpush1.bf16.msra.mxu0 %v569
    %588 = vmatprep.subr.bf16.mxu0 0
    %589 = vmatpush1.bf16.msra.mxu0 %v570
    %590 = vmatprep.subr.bf16.mxu0 0
    %591 = vmatpush1.bf16.msra.mxu0 %v571
    %592 = vmatprep.subr.bf16.mxu0 0
    %593 = vmatpush1.bf16.msra.mxu0 %v572
    %594 = vmatprep.subr.bf16.mxu0 0
    %595 = vmatpush1.bf16.msra.mxu0 %v573
    %596 = vmatprep.subr.bf16.mxu0 0
    %597 = vmatpush1.bf16.msra.mxu0 %v574
    %598 = vmatprep.subr.bf16.mxu0 0
    %599 = vmatpush1.bf16.msra.mxu0 %v575
    %600 = vmatprep.subr.bf16.mxu0 0
    %601 = vmatpush1.bf16.msra.mxu0 0
    %602 = vmatprep.subr.bf16.mxu0 0
    %603 = vmatpush1.bf16.msra.mxu0 0
    %604 = vmatprep.subr.bf16.mxu0 0
    %605 = vmatpush1.bf16.msra.mxu0 0
    %606 = vmatprep.subr.bf16.mxu0 0
    %607 = vmatpush1.bf16.msra.mxu0 0
    %608 = vmatprep.subr.bf16.mxu0 0
    %609 = vmatpush1.bf16.msra.mxu0 0
    %610 = vmatprep.subr.bf16.mxu0 0
    %611 = vmatpush1.bf16.msra.mxu0 0
    %612 = vmatprep.subr.bf16.mxu0 0
    %613 = vmatpush1.bf16.msra.mxu0 0
    %614 = vmatprep.subr.bf16.mxu0 0
    %615 = vmatpush1.bf16.msra.mxu0 0
    %616 = vmatprep.mubr.bf16.mxu0 0
    %617 = vmatmul.mubr.bf16.gmra.mrb[0].mxu0 %v341
    %v618 = vpop.f32.mrb[0].mxu0
    %v619 = vadd.f32 0.0, %v618
    %v620 = vpop.f32.mrb[0].mxu0
    %v621 = vpop.f32.mrb[0].mxu0
    %v622 = vpop.f32.mrb[0].mxu0
    %623 = vdwg.mxu0
    %v624 = vsel %vm450, %v619, -inf
    %625 = vmax.xlane.f32.xlu0 %v624
    %v626 = vpop.xlane.xlu0 %625
    %v627 = vsub.f32 %v619, %v626
    %v628 = vmul.f32 %v627, 1.442695
    %v629 = vpow.pop %v628
    %v630 = vsel %vm450, %v629, 0.0
    %631 = vadd.xlane.f32.xlu0 %v630
    %v632 = vpop.xlane.xlu0 %631
    %v633 = vrcp.pop %v632
    %v634 = vmul.f32 %v629, %v633
    %v635 = vpack.c.bf16 %v634, %v634
    %v638 = vunpack.c.l.b16 %v534
    %v639 = vunpack.c.l.b16 %v535
    %v640 = vpack.c.b16 %v639, %v638
    %v642 = vsel %vm468, %v635, 0
    %v645 = vsel %vm472, %v640, 0
    %647 = vmatprep.subr.bf16.mxu0 0
    %648 = vmatpush1.bf16.msra.mxu0 %v645
    %649 = vmatprep.subr.bf16.mxu0 0
    %650 = vmatpush1.bf16.msra.mxu0 0
    %651 = vmatprep.subr.bf16.mxu0 0
    %652 = vmatpush1.bf16.msra.mxu0 0
    %653 = vmatprep.subr.bf16.mxu0 0
    %654 = vmatpush1.bf16.msra.mxu0 0
    %655 = vmatprep.subr.bf16.mxu0 0
    %656 = vmatpush1.bf16.msra.mxu0 0
    %657 = vmatprep.subr.bf16.mxu0 0
    %658 = vmatpush1.bf16.msra.mxu0 0
    %659 = vmatprep.subr.bf16.mxu0 0
    %660 = vmatpush1.bf16.msra.mxu0 0
    %661 = vmatprep.subr.bf16.mxu0 0
    %662 = vmatpush1.bf16.msra.mxu0 0
    %663 = vmatprep.subr.bf16.mxu0 0
    %664 = vmatpush1.bf16.msra.mxu0 0
    %665 = vmatprep.subr.bf16.mxu0 0
    %666 = vmatpush1.bf16.msra.mxu0 0
    %667 = vmatprep.subr.bf16.mxu0 0
    %668 = vmatpush1.bf16.msra.mxu0 0
    %669 = vmatprep.subr.bf16.mxu0 0
    %670 = vmatpush1.bf16.msra.mxu0 0
    %671 = vmatprep.subr.bf16.mxu0 0
    %672 = vmatpush1.bf16.msra.mxu0 0
    %673 = vmatprep.subr.bf16.mxu0 0
    %674 = vmatpush1.bf16.msra.mxu0 0
    %675 = vmatprep.subr.bf16.mxu0 0
    %676 = vmatpush1.bf16.msra.mxu0 0
    %677 = vmatprep.subr.bf16.mxu0 0
    %678 = vmatpush1.bf16.msra.mxu0 0
    %679 = vmatprep.mubr.bf16.mxu0 0
    %680 = vmatmul.mubr.bf16.gmra.mrb[0].mxu0 %v642
    %v681 = vpop.f32.mrb[0].mxu0
    %v682 = vadd.f32 0.0, %v681
    %v683 = vpop.f32.mrb[0].mxu0
    %v684 = vpop.f32.mrb[0].mxu0
    %v685 = vpop.f32.mrb[0].mxu0
    %686 = vdwg.mxu0
    %v687 = vpack.c.bf16 %v682, %v682
    %688 = vst [vmem:[#allocation2 + $0x1] sm:$0x1] %v687
    %v689 = vld [vmem:[%s1 + $0x80] sm:$0xf]
    %v690 = vld [vmem:[%s1 + $0x84] sm:$0xf]
    %v691 = vld [vmem:[%s1 + $0x88] sm:$0xf]
    %v692 = vld [vmem:[%s1 + $0x8c] sm:$0xf]
    %v693 = vld [vmem:[%s1 + $0x90] sm:$0xf]
    %v694 = vld [vmem:[%s1 + $0x94] sm:$0xf]
    %v695 = vld [vmem:[%s1 + $0x98] sm:$0xf]
    %v696 = vld [vmem:[%s1 + $0x9c] sm:$0xf]
    %v697 = vld [vmem:[%s1 + $0xa0] sm:$0xf]
    %v698 = vld [vmem:[%s1 + $0xa4] sm:$0xf]
    %v699 = vld [vmem:[%s1 + $0xa8] sm:$0xf]
    %v700 = vld [vmem:[%s1 + $0xac] sm:$0xf]
    %v701 = vld [vmem:[%s1 + $0xb0] sm:$0xf]
    %v702 = vld [vmem:[%s1 + $0xb4] sm:$0xf]
    %v703 = vld [vmem:[%s1 + $0xb8] sm:$0xf]
    %v704 = vld [vmem:[%s1 + $0xbc] sm:$0xf]
    %v705 = vld [vmem:[%s2 + $0x8] sm:$0xf]
    %v706 = vld [vmem:[%s2 + $0x18] sm:$0x1]
    %v723 = vunpack.c.l.b16 %v689
    %v724 = vunpack.c.l.b16 %v690
    %v725 = vunpack.c.l.b16 %v691
    %v726 = vunpack.c.l.b16 %v692
    %v727 = vunpack.c.l.b16 %v693
    %v728 = vunpack.c.l.b16 %v694
    %v729 = vunpack.c.l.b16 %v695
    %v730 = vunpack.c.l.b16 %v696
    %v731 = vunpack.c.l.b16 %v697
    %v732 = vunpack.c.l.b16 %v698
    %v733 = vunpack.c.l.b16 %v699
    %v734 = vunpack.c.l.b16 %v700
    %v735 = vunpack.c.l.b16 %v701
    %v736 = vunpack.c.l.b16 %v702
    %v737 = vunpack.c.l.b16 %v703
    %v738 = vunpack.c.l.b16 %v704
    %v739 = vpack.c.b16 %v724, %v723
    %v740 = vpack.c.b16 %v726, %v725
    %v741 = vpack.c.b16 %v728, %v727
    %v742 = vpack.c.b16 %v730, %v729
    %v743 = vpack.c.b16 %v732, %v731
    %v744 = vpack.c.b16 %v734, %v733
    %v745 = vpack.c.b16 %v736, %v735
    %v746 = vpack.c.b16 %v738, %v737
    %755 = vmatprep.subr.bf16.mxu0 0
    %756 = vmatpush1.bf16.msra.mxu0 %v739
    %757 = vmatprep.subr.bf16.mxu0 0
    %758 = vmatpush1.bf16.msra.mxu0 %v740
    %759 = vmatprep.subr.bf16.mxu0 0
    %760 = vmatpush1.bf16.msra.mxu0 %v741
    %761 = vmatprep.subr.bf16.mxu0 0
    %762 = vmatpush1.bf16.msra.mxu0 %v742
    %763 = vmatprep.subr.bf16.mxu0 0
    %764 = vmatpush1.bf16.msra.mxu0 %v743
    %765 = vmatprep.subr.bf16.mxu0 0
    %766 = vmatpush1.bf16.msra.mxu0 %v744
    %767 = vmatprep.subr.bf16.mxu0 0
    %768 = vmatpush1.bf16.msra.mxu0 %v745
    %769 = vmatprep.subr.bf16.mxu0 0
    %770 = vmatpush1.bf16.msra.mxu0 %v746
    %771 = vmatprep.subr.bf16.mxu0 0
    %772 = vmatpush1.bf16.msra.mxu0 0
    %773 = vmatprep.subr.bf16.mxu0 0
    %774 = vmatpush1.bf16.msra.mxu0 0
    %775 = vmatprep.subr.bf16.mxu0 0
    %776 = vmatpush1.bf16.msra.mxu0 0
    %777 = vmatprep.subr.bf16.mxu0 0
    %778 = vmatpush1.bf16.msra.mxu0 0
    %779 = vmatprep.subr.bf16.mxu0 0
    %780 = vmatpush1.bf16.msra.mxu0 0
    %781 = vmatprep.subr.bf16.mxu0 0
    %782 = vmatpush1.bf16.msra.mxu0 0
    %783 = vmatprep.subr.bf16.mxu0 0
    %784 = vmatpush1.bf16.msra.mxu0 0
    %785 = vmatprep.subr.bf16.mxu0 0
    %786 = vmatpush1.bf16.msra.mxu0 0
    %787 = vmatprep.mubr.bf16.mxu0 0
    %788 = vmatmul.mubr.bf16.gmra.mrb[0].mxu0 %v342
    %v789 = vpop.f32.mrb[0].mxu0
    %v790 = vadd.f32 0.0, %v789
    %v791 = vpop.f32.mrb[0].mxu0
    %v792 = vpop.f32.mrb[0].mxu0
    %v793 = vpop.f32.mrb[0].mxu0
    %794 = vdwg.mxu0
    %v795 = vsel %vm450, %v790, -inf
    %796 = vmax.xlane.f32.xlu0 %v795
    %v797 = vpop.xlane.xlu0 %796
    %v798 = vsub.f32 %v790, %v797
    %v799 = vmul.f32 %v798, 1.442695
    %v800 = vpow.pop %v799
    %v801 = vsel %vm450, %v800, 0.0
    %802 = vadd.xlane.f32.xlu0 %v801
    %v803 = vpop.xlane.xlu0 %802
    %v804 = vrcp.pop %v803
    %v805 = vmul.f32 %v800, %v804
    %v806 = vpack.c.bf16 %v805, %v805
    %v809 = vunpack.c.l.b16 %v705
    %v810 = vunpack.c.l.b16 %v706
    %v811 = vpack.c.b16 %v810, %v809
    %v813 = vsel %vm468, %v806, 0
    %v816 = vsel %vm472, %v811, 0
    %818 = vmatprep.subr.bf16.mxu0 0
    %819 = vmatpush1.bf16.msra.mxu0 %v816
    %820 = vmatprep.subr.bf16.mxu0 0
    %821 = vmatpush1.bf16.msra.mxu0 0
    %822 = vmatprep.subr.bf16.mxu0 0
    %823 = vmatpush1.bf16.msra.mxu0 0
    %824 = vmatprep.subr.bf16.mxu0 0
    %825 = vmatpush1.bf16.msra.mxu0 0
    %826 = vmatprep.subr.bf16.mxu0 0
    %827 = vmatpush1.bf16.msra.mxu0 0
    %828 = vmatprep.subr.bf16.mxu0 0
    %829 = vmatpush1.bf16.msra.mxu0 0
    %830 = vmatprep.subr.bf16.mxu0 0
    %831 = vmatpush1.bf16.msra.mxu0 0
    %832 = vmatprep.subr.bf16.mxu0 0
    %833 = vmatpush1.bf16.msra.mxu0 0
    %834 = vmatprep.subr.bf16.mxu0 0
    %835 = vmatpush1.bf16.msra.mxu0 0
    %836 = vmatprep.subr.bf16.mxu0 0
    %837 = vmatpush1.bf16.msra.mxu0 0
    %838 = vmatprep.subr.bf16.mxu0 0
    %839 = vmatpush1.bf16.msra.mxu0 0
    %840 = vmatprep.subr.bf16.mxu0 0
    %841 = vmatpush1.bf16.msra.mxu0 0
    %842 = vmatprep.subr.bf16.mxu0 0
    %843 = vmatpush1.bf16.msra.mxu0 0
    %844 = vmatprep.subr.bf16.mxu0 0
    %845 = vmatpush1.bf16.msra.mxu0 0
    %846 = vmatprep.subr.bf16.mxu0 0
    %847 = vmatpush1.bf16.msra.mxu0 0
    %848 = vmatprep.subr.bf16.mxu0 0
    %849 = vmatpush1.bf16.msra.mxu0 0
    %850 = vmatprep.mubr.bf16.mxu0 0
    %851 = vmatmul.mubr.bf16.gmra.mrb[0].mxu0 %v813
    %v852 = vpop.f32.mrb[0].mxu0
    %v853 = vadd.f32 0.0, %v852
    %v854 = vpop.f32.mrb[0].mxu0
    %v855 = vpop.f32.mrb[0].mxu0
    %v856 = vpop.f32.mrb[0].mxu0
    %857 = vdwg.mxu0
    %v858 = vpack.c.bf16 %v853, %v853
    %859 = vst [vmem:[#allocation2 + $0x2] sm:$0x1] %v858
    %v860 = vld [vmem:[%s1 + $0xc0] sm:$0xf]
    %v861 = vld [vmem:[%s1 + $0xc4] sm:$0xf]
    %v862 = vld [vmem:[%s1 + $0xc8] sm:$0xf]
    %v863 = vld [vmem:[%s1 + $0xcc] sm:$0xf]
    %v864 = vld [vmem:[%s1 + $0xd0] sm:$0xf]
    %v865 = vld [vmem:[%s1 + $0xd4] sm:$0xf]
    %v866 = vld [vmem:[%s1 + $0xd8] sm:$0xf]
    %v867 = vld [vmem:[%s1 + $0xdc] sm:$0xf]
    %v868 = vld [vmem:[%s1 + $0xe0] sm:$0xf]
    %v869 = vld [vmem:[%s1 + $0xe4] sm:$0xf]
    %v870 = vld [vmem:[%s1 + $0xe8] sm:$0xf]
    %v871 = vld [vmem:[%s1 + $0xec] sm:$0xf]
    %v872 = vld [vmem:[%s1 + $0xf0] sm:$0xf]
    %v873 = vld [vmem:[%s1 + $0xf4] sm:$0xf]
    %v874 = vld [vmem:[%s1 + $0xf8] sm:$0xf]
    %v875 = vld [vmem:[%s1 + $0xfc] sm:$0xf]
    %v876 = vld [vmem:[%s2 + $0xc] sm:$0xf]
    %v877 = vld [vmem:[%s2 + $0x1c] sm:$0x1]
    %v894 = vunpack.c.l.b16 %v860
    %v895 = vunpack.c.l.b16 %v861
    %v896 = vunpack.c.l.b16 %v862
    %v897 = vunpack.c.l.b16 %v863
    %v898 = vunpack.c.l.b16 %v864
    %v899 = vunpack.c.l.b16 %v865
    %v900 = vunpack.c.l.b16 %v866
    %v901 = vunpack.c.l.b16 %v867
    %v902 = vunpack.c.l.b16 %v868
    %v903 = vunpack.c.l.b16 %v869
    %v904 = vunpack.c.l.b16 %v870
    %v905 = vunpack.c.l.b16 %v871
    %v906 = vunpack.c.l.b16 %v872
    %v907 = vunpack.c.l.b16 %v873
    %v908 = vunpack.c.l.b16 %v874
    %v909 = vunpack.c.l.b16 %v875
    %v910 = vpack.c.b16 %v895, %v894
    %v911 = vpack.c.b16 %v897, %v896
    %v912 = vpack.c.b16 %v899, %v898
    %v913 = vpack.c.b16 %v901, %v900
    %v914 = vpack.c.b16 %v903, %v902
    %v915 = vpack.c.b16 %v905, %v904
    %v916 = vpack.c.b16 %v907, %v906
    %v917 = vpack.c.b16 %v909, %v908
    %926 = vmatprep.subr.bf16.mxu0 0
    %927 = vmatpush1.bf16.msra.mxu0 %v910
    %928 = vmatprep.subr.bf16.mxu0 0
    %929 = vmatpush1.bf16.msra.mxu0 %v911
    %930 = vmatprep.subr.bf16.mxu0 0
    %931 = vmatpush1.bf16.msra.mxu0 %v912
    %932 = vmatprep.subr.bf16.mxu0 0
    %933 = vmatpush1.bf16.msra.mxu0 %v913
    %934 = vmatprep.subr.bf16.mxu0 0
    %935 = vmatpush1.bf16.msra.mxu0 %v914
    %936 = vmatprep.subr.bf16.mxu0 0
    %937 = vmatpush1.bf16.msra.mxu0 %v915
    %938 = vmatprep.subr.bf16.mxu0 0
    %939 = vmatpush1.bf16.msra.mxu0 %v916
    %940 = vmatprep.subr.bf16.mxu0 0
    %941 = vmatpush1.bf16.msra.mxu0 %v917
    %942 = vmatprep.subr.bf16.mxu0 0
    %943 = vmatpush1.bf16.msra.mxu0 0
    %944 = vmatprep.subr.bf16.mxu0 0
    %945 = vmatpush1.bf16.msra.mxu0 0
    %946 = vmatprep.subr.bf16.mxu0 0
    %947 = vmatpush1.bf16.msra.mxu0 0
    %948 = vmatprep.subr.bf16.mxu0 0
    %949 = vmatpush1.bf16.msra.mxu0 0
    %950 = vmatprep.subr.bf16.mxu0 0
    %951 = vmatpush1.bf16.msra.mxu0 0
    %952 = vmatprep.subr.bf16.mxu0 0
    %953 = vmatpush1.bf16.msra.mxu0 0
    %954 = vmatprep.subr.bf16.mxu0 0
    %955 = vmatpush1.bf16.msra.mxu0 0
    %956 = vmatprep.subr.bf16.mxu0 0
    %957 = vmatpush1.bf16.msra.mxu0 0
    %958 = vmatprep.mubr.bf16.mxu0 0
    %959 = vmatmul.mubr.bf16.gmra.mrb[0].mxu0 %v343
    %v960 = vpop.f32.mrb[0].mxu0
    %v961 = vadd.f32 0.0, %v960
    %v962 = vpop.f32.mrb[0].mxu0
    %v963 = vpop.f32.mrb[0].mxu0
    %v964 = vpop.f32.mrb[0].mxu0
    %965 = vdwg.mxu0
    %v966 = vsel %vm450, %v961, -inf
    %967 = vmax.xlane.f32.xlu0 %v966
    %v968 = vpop.xlane.xlu0 %967
    %v969 = vsub.f32 %v961, %v968
    %v970 = vmul.f32 %v969, 1.442695
    %v971 = vpow.pop %v970
    %v972 = vsel %vm450, %v971, 0.0
    %973 = vadd.xlane.f32.xlu0 %v972
    %v974 = vpop.xlane.xlu0 %973
    %v975 = vrcp.pop %v974
    %v976 = vmul.f32 %v971, %v975
    %v977 = vpack.c.bf16 %v976, %v976
    %v980 = vunpack.c.l.b16 %v876
    %v981 = vunpack.c.l.b16 %v877
    %v982 = vpack.c.b16 %v981, %v980
    %v984 = vsel %vm468, %v977, 0
    %v987 = vsel %vm472, %v982, 0
    %989 = vmatprep.subr.bf16.mxu0 0
    %990 = vmatpush1.bf16.msra.mxu0 %v987
    %991 = vmatprep.subr.bf16.mxu0 0
    %992 = vmatpush1.bf16.msra.mxu0 0
    %993 = vmatprep.subr.bf16.mxu0 0
    %994 = vmatpush1.bf16.msra.mxu0 0
    %995 = vmatprep.subr.bf16.mxu0 0
    %996 = vmatpush1.bf16.msra.mxu0 0
    %997 = vmatprep.subr.bf16.mxu0 0
    %998 = vmatpush1.bf16.msra.mxu0 0
    %999 = vmatprep.subr.bf16.mxu0 0
    %1000 = vmatpush1.bf16.msra.mxu0 0
    %1001 = vmatprep.subr.bf16.mxu0 0
    %1002 = vmatpush1.bf16.msra.mxu0 0
    %1003 = vmatprep.subr.bf16.mxu0 0
    %1004 = vmatpush1.bf16.msra.mxu0 0
    %1005 = vmatprep.subr.bf16.mxu0 0
    %1006 = vmatpush1.bf16.msra.mxu0 0
    %1007 = vmatprep.subr.bf16.mxu0 0
    %1008 = vmatpush1.bf16.msra.mxu0 0
    %1009 = vmatprep.subr.bf16.mxu0 0
    %1010 = vmatpush1.bf16.msra.mxu0 0
    %1011 = vmatprep.subr.bf16.mxu0 0
    %1012 = vmatpush1.bf16.msra.mxu0 0
    %1013 = vmatprep.subr.bf16.mxu0 0
    %1014 = vmatpush1.bf16.msra.mxu0 0
    %1015 = vmatprep.subr.bf16.mxu0 0
    %1016 = vmatpush1.bf16.msra.mxu0 0
    %1017 = vmatprep.subr.bf16.mxu0 0
    %1018 = vmatpush1.bf16.msra.mxu0 0
    %1019 = vmatprep.subr.bf16.mxu0 0
    %1020 = vmatpush1.bf16.msra.mxu0 0
    %1021 = vmatprep.mubr.bf16.mxu0 0
    %1022 = vmatmul.mubr.bf16.gmra.mrb[0].mxu0 %v984
    %v1023 = vpop.f32.mrb[0].mxu0
    %v1024 = vadd.f32 0.0, %v1023
    %v1025 = vpop.f32.mrb[0].mxu0
    %v1026 = vpop.f32.mrb[0].mxu0
    %v1027 = vpop.f32.mrb[0].mxu0
    %1028 = vdwg.mxu0
    %v1029 = vpack.c.bf16 %v1024, %v1024
    %1030 = vst [vmem:[#allocation2 + $0x3] sm:$0x1] %v1029
    %v1031 = vld [vmem:[#allocation2] sm:$0xf]
    %v1032 = vld [vmem:[#allocation3] sm:$0xff]
    %v1033 = vld [vmem:[#allocation3 + $0x8] sm:$0xff]
    %v1034 = vld [vmem:[#allocation3 + $0x10] sm:$0xff]
    %v1035 = vld [vmem:[#allocation3 + $0x18] sm:$0xff]
    %v1036 = vld [vmem:[#allocation3 + $0x20] sm:$0xff]
    %v1037 = vld [vmem:[#allocation3 + $0x28] sm:$0xff]
    %v1038 = vld [vmem:[#allocation3 + $0x30] sm:$0xff]
    %v1039 = vld [vmem:[#allocation3 + $0x38] sm:$0xff]
    %v1040 = vld [vmem:[#allocation3 + $0x40] sm:$0xff]
    %v1041 = vld [vmem:[#allocation3 + $0x48] sm:$0xff]
    %v1042 = vld [vmem:[#allocation3 + $0x50] sm:$0xff]
    %v1043 = vld [vmem:[#allocation3 + $0x58] sm:$0xff]
    %v1044 = vld [vmem:[#allocation3 + $0x60] sm:$0xff]
    %v1045 = vld [vmem:[#allocation3 + $0x68] sm:$0xff]
    %v1046 = vld [vmem:[#allocation3 + $0x70] sm:$0xff]
    %v1047 = vld [vmem:[#allocation3 + $0x78] sm:$0xff]
    %v1048 = vld [vmem:[#allocation3 + $0x80] sm:$0xff]
    %v1049 = vld [vmem:[#allocation3 + $0x88] sm:$0xff]
    %v1050 = vld [vmem:[#allocation3 + $0x90] sm:$0xff]
    %v1051 = vld [vmem:[#allocation3 + $0x98] sm:$0xff]
    %v1052 = vld [vmem:[#allocation3 + $0xa0] sm:$0xff]
    %v1053 = vld [vmem:[#allocation3 + $0xa8] sm:$0xff]
    %v1054 = vld [vmem:[#allocation3 + $0xb0] sm:$0xff]
    %v1055 = vld [vmem:[#allocation3 + $0xb8] sm:$0xff]
    %v1056 = vld [vmem:[#allocation3 + $0xc0] sm:$0xff]
    %v1057 = vld [vmem:[#allocation3 + $0xc8] sm:$0xff]
    %v1058 = vld [vmem:[#allocation3 + $0xd0] sm:$0xff]
    %v1059 = vld [vmem:[#allocation3 + $0xd8] sm:$0xff]
    %v1060 = vld [vmem:[#allocation3 + $0xe0] sm:$0xff]
    %v1061 = vld [vmem:[#allocation3 + $0xe8] sm:$0xff]
    %v1062 = vld [vmem:[#allocation3 + $0xf0] sm:$0xff]
    %v1063 = vld [vmem:[#allocation3 + $0xf8] sm:$0xff]
    %v1064 = vld [vmem:[#allocation3 + $0x100] sm:$0xff]
    %v1065 = vld [vmem:[#allocation3 + $0x108] sm:$0xff]
    %v1066 = vld [vmem:[#allocation3 + $0x110] sm:$0xff]
    %v1067 = vld [vmem:[#allocation3 + $0x118] sm:$0xff]
    %v1068 = vld [vmem:[#allocation3 + $0x120] sm:$0xff]
    %v1069 = vld [vmem:[#allocation3 + $0x128] sm:$0xff]
    %v1070 = vld [vmem:[#allocation3 + $0x130] sm:$0xff]
    %v1071 = vld [vmem:[#allocation3 + $0x138] sm:$0xff]
    %v1072 = vld [vmem:[#allocation3 + $0x140] sm:$0xff]
    %v1073 = vld [vmem:[#allocation3 + $0x148] sm:$0xff]
    %v1074 = vld [vmem:[#allocation3 + $0x150] sm:$0xff]
    %v1075 = vld [vmem:[#allocation3 + $0x158] sm:$0xff]
    %v1076 = vld [vmem:[#allocation3 + $0x160] sm:$0xff]
    %v1077 = vld [vmem:[#allocation3 + $0x168] sm:$0xff]
    %v1078 = vld [vmem:[#allocation3 + $0x170] sm:$0xff]
    %v1079 = vld [vmem:[#allocation3 + $0x178] sm:$0xff]
    %v1080 = vld [vmem:[#allocation3 + $0x180] sm:$0xff]
    %v1081 = vld [vmem:[#allocation3 + $0x188] sm:$0xff]
    %v1082 = vld [vmem:[#allocation3 + $0x190] sm:$0xff]
    %v1083 = vld [vmem:[#allocation3 + $0x198] sm:$0xff]
    %v1084 = vld [vmem:[#allocation3 + $0x1a0] sm:$0xff]
    %v1085 = vld [vmem:[#allocation3 + $0x1a8] sm:$0xff]
    %v1086 = vld [vmem:[#allocation3 + $0x1b0] sm:$0xff]
    %v1087 = vld [vmem:[#allocation3 + $0x1b8] sm:$0xff]
    %v1088 = vld [vmem:[#allocation3 + $0x1c0] sm:$0xff]
    %v1089 = vld [vmem:[#allocation3 + $0x1c8] sm:$0xff]
    %v1090 = vld [vmem:[#allocation3 + $0x1d0] sm:$0xff]
    %v1091 = vld [vmem:[#allocation3 + $0x1d8] sm:$0xff]
    %v1092 = vld [vmem:[#allocation3 + $0x1e0] sm:$0xff]
    %v1093 = vld [vmem:[#allocation3 + $0x1e8] sm:$0xff]
    %v1094 = vld [vmem:[#allocation3 + $0x1f0] sm:$0xff]
    %v1095 = vld [vmem:[#allocation3 + $0x1f8] sm:$0xff]
    %v1096 = vld [vmem:[#allocation3 + $0x200] sm:$0xff]
    %v1097 = vld [vmem:[#allocation3 + $0x208] sm:$0xff]
    %v1098 = vld [vmem:[#allocation3 + $0x210] sm:$0xff]
    %v1099 = vld [vmem:[#allocation3 + $0x218] sm:$0xff]
    %v1100 = vld [vmem:[#allocation3 + $0x220] sm:$0xff]
    %v1101 = vld [vmem:[#allocation3 + $0x228] sm:$0xff]
    %v1102 = vld [vmem:[#allocation3 + $0x230] sm:$0xff]
    %v1103 = vld [vmem:[#allocation3 + $0x238] sm:$0xff]
    %v1104 = vld [vmem:[#allocation3 + $0x240] sm:$0xff]
    %v1105 = vld [vmem:[#allocation3 + $0x248] sm:$0xff]
    %v1106 = vld [vmem:[#allocation3 + $0x250] sm:$0xff]
    %v1107 = vld [vmem:[#allocation3 + $0x258] sm:$0xff]
    %v1108 = vld [vmem:[#allocation3 + $0x260] sm:$0xff]
    %v1109 = vld [vmem:[#allocation3 + $0x268] sm:$0xff]
    %v1110 = vld [vmem:[#allocation3 + $0x270] sm:$0xff]
    %v1111 = vld [vmem:[#allocation3 + $0x278] sm:$0xff]
    %v1112 = vld [vmem:[#allocation3 + $0x280] sm:$0xff]
    %v1113 = vld [vmem:[#allocation3 + $0x288] sm:$0xff]
    %v1114 = vld [vmem:[#allocation3 + $0x290] sm:$0xff]
    %v1115 = vld [vmem:[#allocation3 + $0x298] sm:$0xff]
    %v1116 = vld [vmem:[#allocation3 + $0x2a0] sm:$0xff]
    %v1117 = vld [vmem:[#allocation3 + $0x2a8] sm:$0xff]
    %v1118 = vld [vmem:[#allocation3 + $0x2b0] sm:$0xff]
    %v1119 = vld [vmem:[#allocation3 + $0x2b8] sm:$0xff]
    %v1120 = vld [vmem:[#allocation3 + $0x2c0] sm:$0xff]
    %v1121 = vld [vmem:[#allocation3 + $0x2c8] sm:$0xff]
    %v1122 = vld [vmem:[#allocation3 + $0x2d0] sm:$0xff]
    %v1123 = vld [vmem:[#allocation3 + $0x2d8] sm:$0xff]
    %v1124 = vld [vmem:[#allocation3 + $0x2e0] sm:$0xff]
    %v1125 = vld [vmem:[#allocation3 + $0x2e8] sm:$0xff]
    %v1126 = vld [vmem:[#allocation3 + $0x2f0] sm:$0xff]
    %v1127 = vld [vmem:[#allocation3 + $0x2f8] sm:$0xff]
    %v1128 = vld [vmem:[#allocation3 + $0x300] sm:$0xff]
    %v1129 = vld [vmem:[#allocation3 + $0x308] sm:$0xff]
    %v1130 = vld [vmem:[#allocation3 + $0x310] sm:$0xff]
    %v1131 = vld [vmem:[#allocation3 + $0x318] sm:$0xff]
    %v1132 = vld [vmem:[#allocation3 + $0x320] sm:$0xff]
    %v1133 = vld [vmem:[#allocation3 + $0x328] sm:$0xff]
    %v1134 = vld [vmem:[#allocation3 + $0x330] sm:$0xff]
    %v1135 = vld [vmem:[#allocation3 + $0x338] sm:$0xff]
    %v1136 = vld [vmem:[#allocation3 + $0x340] sm:$0xff]
    %v1137 = vld [vmem:[#allocation3 + $0x348] sm:$0xff]
    %v1138 = vld [vmem:[#allocation3 + $0x350] sm:$0xff]
    %v1139 = vld [vmem:[#allocation3 + $0x358] sm:$0xff]
    %v1140 = vld [vmem:[#allocation3 + $0x360] sm:$0xff]
    %v1141 = vld [vmem:[#allocation3 + $0x368] sm:$0xff]
    %v1142 = vld [vmem:[#allocation3 + $0x370] sm:$0xff]
    %v1143 = vld [vmem:[#allocation3 + $0x378] sm:$0xff]
    %v1144 = vld [vmem:[#allocation3 + $0x380] sm:$0xff]
    %v1145 = vld [vmem:[#allocation3 + $0x388] sm:$0xff]
    %v1146 = vld [vmem:[#allocation3 + $0x390] sm:$0xff]
    %v1147 = vld [vmem:[#allocation3 + $0x398] sm:$0xff]
    %v1148 = vld [vmem:[#allocation3 + $0x3a0] sm:$0xff]
    %v1149 = vld [vmem:[#allocation3 + $0x3a8] sm:$0xff]
    %v1150 = vld [vmem:[#allocation3 + $0x3b0] sm:$0xff]
    %v1151 = vld [vmem:[#allocation3 + $0x3b8] sm:$0xff]
    %v1152 = vld [vmem:[#allocation3 + $0x3c0] sm:$0xff]
    %v1153 = vld [vmem:[#allocation3 + $0x3c8] sm:$0xff]
    %v1154 = vld [vmem:[#allocation3 + $0x3d0] sm:$0xff]
    %v1155 = vld [vmem:[#allocation3 + $0x3d8] sm:$0xff]
    %v1156 = vld [vmem:[#allocation3 + $0x3e0] sm:$0xff]
    %v1157 = vld [vmem:[#allocation3 + $0x3e8] sm:$0xff]
    %v1158 = vld [vmem:[#allocation3 + $0x3f0] sm:$0xff]
    %v1159 = vld [vmem:[#allocation3 + $0x3f8] sm:$0xff]
    %v1160 = vld [vmem:[%s6] sm:$0xf]
    %v1162 = vlaneseq
    %v1163 = vshrl.u32 %v1162, 7
    %v1164 = vsub.s32 0, %v1163
    %v1165 = vrot.slane %v1160, %v1164
    %v1166 = vlaneseq
    %v1167 = vshrl.u32 %v1166, 7
    %v1168 = vsub.s32 1, %v1167
    %v1169 = vrot.slane %v1160, %v1168
    %v1170 = vlaneseq
    %v1171 = vshrl.u32 %v1170, 7
    %v1172 = vsub.s32 2, %v1171
    %v1173 = vrot.slane %v1160, %v1172
    %v1174 = vlaneseq
    %v1175 = vshrl.u32 %v1174, 7
    %v1176 = vsub.s32 3, %v1175
    %v1177 = vrot.slane %v1160, %v1176
    %v1184 = vunpack.c.l.s4 1966171168
    %v1185 = vunpack.c.0.s8 %v1184
    %v1186 = vlaneseq
    %v1187 = vshrl.u32 %v1186, 7
    %v1188 = vsub.s32 %v1185, %v1187
    %v1189 = vrot.slane %v1031, %v1188
    %v1190 = vcombine.high %v1189, %v1189
    %v1192 = vunpack.c.l.s4 1966171168
    %v1193 = vunpack.c.0.s8 %v1192
    %v1194 = vlaneseq
    %v1195 = vshrl.u32 %v1194, 7
    %v1196 = vsub.s32 %v1193, %v1195
    %v1197 = vrot.slane %v1189, %v1196
    %v1199 = vunpack.c.l.s4 1966171168
    %v1200 = vunpack.c.0.s8 %v1199
    %v1201 = vlaneseq
    %v1202 = vshrl.u32 %v1201, 7
    %v1203 = vsub.s32 %v1200, %v1202
    %v1204 = vrot.slane %v1190, %v1203
    %v1205 = vcombine.high %v1197, %v1197
    %v1206 = vcombine.high %v1204, %v1204
    %v1339 = vunpack.c.l.b16 %v1032
    %v1340 = vunpack.c.h.b16 %v1032
    %v1341 = vunpack.c.l.b16 %v1033
    %v1342 = vunpack.c.h.b16 %v1033
    %v1343 = vunpack.c.l.b16 %v1034
    %v1344 = vunpack.c.h.b16 %v1034
    %v1345 = vunpack.c.l.b16 %v1035
    %v1346 = vunpack.c.h.b16 %v1035
    %v1347 = vunpack.c.l.b16 %v1036
    %v1348 = vunpack.c.h.b16 %v1036
    %v1349 = vunpack.c.l.b16 %v1037
    %v1350 = vunpack.c.h.b16 %v1037
    %v1351 = vunpack.c.l.b16 %v1038
    %v1352 = vunpack.c.h.b16 %v1038
    %v1353 = vunpack.c.l.b16 %v1039
    %v1354 = vunpack.c.h.b16 %v1039
    %v1355 = vunpack.c.l.b16 %v1040
    %v1356 = vunpack.c.h.b16 %v1040
    %v1357 = vunpack.c.l.b16 %v1041
    %v1358 = vunpack.c.h.b16 %v1041
    %v1359 = vunpack.c.l.b16 %v1042
    %v1360 = vunpack.c.h.b16 %v1042
    %v1361 = vunpack.c.l.b16 %v1043
    %v1362 = vunpack.c.h.b16 %v1043
    %v1363 = vunpack.c.l.b16 %v1044
    %v1364 = vunpack.c.h.b16 %v1044
    %v1365 = vunpack.c.l.b16 %v1045
    %v1366 = vunpack.c.h.b16 %v1045
    %v1367 = vunpack.c.l.b16 %v1046
    %v1368 = vunpack.c.h.b16 %v1046
    %v1369 = vunpack.c.l.b16 %v1047
    %v1370 = vunpack.c.h.b16 %v1047
    %v1371 = vunpack.c.l.b16 %v1048
    %v1372 = vunpack.c.h.b16 %v1048
    %v1373 = vunpack.c.l.b16 %v1049
    %v1374 = vunpack.c.h.b16 %v1049
    %v1375 = vunpack.c.l.b16 %v1050
    %v1376 = vunpack.c.h.b16 %v1050
    %v1377 = vunpack.c.l.b16 %v1051
    %v1378 = vunpack.c.h.b16 %v1051
    %v1379 = vunpack.c.l.b16 %v1052
    %v1380 = vunpack.c.h.b16 %v1052
    %v1381 = vunpack.c.l.b16 %v1053
    %v1382 = vunpack.c.h.b16 %v1053
    %v1383 = vunpack.c.l.b16 %v1054
    %v1384 = vunpack.c.h.b16 %v1054
    %v1385 = vunpack.c.l.b16 %v1055
    %v1386 = vunpack.c.h.b16 %v1055
    %v1387 = vunpack.c.l.b16 %v1056
    %v1388 = vunpack.c.h.b16 %v1056
    %v1389 = vunpack.c.l.b16 %v1057
    %v1390 = vunpack.c.h.b16 %v1057
    %v1391 = vunpack.c.l.b16 %v1058
    %v1392 = vunpack.c.h.b16 %v1058
    %v1393 = vunpack.c.l.b16 %v1059
    %v1394 = vunpack.c.h.b16 %v1059
    %v1395 = vunpack.c.l.b16 %v1060
    %v1396 = vunpack.c.h.b16 %v1060
    %v1397 = vunpack.c.l.b16 %v1061
    %v1398 = vunpack.c.h.b16 %v1061
    %v1399 = vunpack.c.l.b16 %v1062
    %v1400 = vunpack.c.h.b16 %v1062
    %v1401 = vunpack.c.l.b16 %v1063
    %v1402 = vunpack.c.h.b16 %v1063
    %v1403 = vunpack.c.l.b16 %v1064
    %v1404 = vunpack.c.h.b16 %v1064
    %v1405 = vunpack.c.l.b16 %v1065
    %v1406 = vunpack.c.h.b16 %v1065
    %v1407 = vunpack.c.l.b16 %v1066
    %v1408 = vunpack.c.h.b16 %v1066
    %v1409 = vunpack.c.l.b16 %v1067
    %v1410 = vunpack.c.h.b16 %v1067
    %v1411 = vunpack.c.l.b16 %v1068
    %v1412 = vunpack.c.h.b16 %v1068
    %v1413 = vunpack.c.l.b16 %v1069
    %v1414 = vunpack.c.h.b16 %v1069
    %v1415 = vunpack.c.l.b16 %v1070
    %v1416 = vunpack.c.h.b16 %v1070
    %v1417 = vunpack.c.l.b16 %v1071
    %v1418 = vunpack.c.h.b16 %v1071
    %v1419 = vunpack.c.l.b16 %v1072
    %v1420 = vunpack.c.h.b16 %v1072
    %v1421 = vunpack.c.l.b16 %v1073
    %v1422 = vunpack.c.h.b16 %v1073
    %v1423 = vunpack.c.l.b16 %v1074
    %v1424 = vunpack.c.h.b16 %v1074
    %v1425 = vunpack.c.l.b16 %v1075
    %v1426 = vunpack.c.h.b16 %v1075
    %v1427 = vunpack.c.l.b16 %v1076
    %v1428 = vunpack.c.h.b16 %v1076
    %v1429 = vunpack.c.l.b16 %v1077
    %v1430 = vunpack.c.h.b16 %v1077
    %v1431 = vunpack.c.l.b16 %v1078
    %v1432 = vunpack.c.h.b16 %v1078
    %v1433 = vunpack.c.l.b16 %v1079
    %v1434 = vunpack.c.h.b16 %v1079
    %v1435 = vunpack.c.l.b16 %v1080
    %v1436 = vunpack.c.h.b16 %v1080
    %v1437 = vunpack.c.l.b16 %v1081
    %v1438 = vunpack.c.h.b16 %v1081
    %v1439 = vunpack.c.l.b16 %v1082
    %v1440 = vunpack.c.h.b16 %v1082
    %v1441 = vunpack.c.l.b16 %v1083
    %v1442 = vunpack.c.h.b16 %v1083
    %v1443 = vunpack.c.l.b16 %v1084
    %v1444 = vunpack.c.h.b16 %v1084
    %v1445 = vunpack.c.l.b16 %v1085
    %v1446 = vunpack.c.h.b16 %v1085
    %v1447 = vunpack.c.l.b16 %v1086
    %v1448 = vunpack.c.h.b16 %v1086
    %v1449 = vunpack.c.l.b16 %v1087
    %v1450 = vunpack.c.h.b16 %v1087
    %v1451 = vunpack.c.l.b16 %v1088
    %v1452 = vunpack.c.h.b16 %v1088
    %v1453 = vunpack.c.l.b16 %v1089
    %v1454 = vunpack.c.h.b16 %v1089
    %v1455 = vunpack.c.l.b16 %v1090
    %v1456 = vunpack.c.h.b16 %v1090
    %v1457 = vunpack.c.l.b16 %v1091
    %v1458 = vunpack.c.h.b16 %v1091
    %v1459 = vunpack.c.l.b16 %v1092
    %v1460 = vunpack.c.h.b16 %v1092
    %v1461 = vunpack.c.l.b16 %v1093
    %v1462 = vunpack.c.h.b16 %v1093
    %v1463 = vunpack.c.l.b16 %v1094
    %v1464 = vunpack.c.h.b16 %v1094
    %v1465 = vunpack.c.l.b16 %v1095
    %v1466 = vunpack.c.h.b16 %v1095
    %v1467 = vunpack.c.l.b16 %v1096
    %v1468 = vunpack.c.h.b16 %v1096
    %v1469 = vunpack.c.l.b16 %v1097
    %v1470 = vunpack.c.h.b16 %v1097
    %v1471 = vunpack.c.l.b16 %v1098
    %v1472 = vunpack.c.h.b16 %v1098
    %v1473 = vunpack.c.l.b16 %v1099
    %v1474 = vunpack.c.h.b16 %v1099
    %v1475 = vunpack.c.l.b16 %v1100
    %v1476 = vunpack.c.h.b16 %v1100
    %v1477 = vunpack.c.l.b16 %v1101
    %v1478 = vunpack.c.h.b16 %v1101
    %v1479 = vunpack.c.l.b16 %v1102
    %v1480 = vunpack.c.h.b16 %v1102
    %v1481 = vunpack.c.l.b16 %v1103
    %v1482 = vunpack.c.h.b16 %v1103
    %v1483 = vunpack.c.l.b16 %v1104
    %v1484 = vunpack.c.h.b16 %v1104
    %v1485 = vunpack.c.l.b16 %v1105
    %v1486 = vunpack.c.h.b16 %v1105
    %v1487 = vunpack.c.l.b16 %v1106
    %v1488 = vunpack.c.h.b16 %v1106
    %v1489 = vunpack.c.l.b16 %v1107
    %v1490 = vunpack.c.h.b16 %v1107
    %v1491 = vunpack.c.l.b16 %v1108
    %v1492 = vunpack.c.h.b16 %v1108
    %v1493 = vunpack.c.l.b16 %v1109
    %v1494 = vunpack.c.h.b16 %v1109
    %v1495 = vunpack.c.l.b16 %v1110
    %v1496 = vunpack.c.h.b16 %v1110
    %v1497 = vunpack.c.l.b16 %v1111
    %v1498 = vunpack.c.h.b16 %v1111
    %v1499 = vunpack.c.l.b16 %v1112
    %v1500 = vunpack.c.h.b16 %v1112
    %v1501 = vunpack.c.l.b16 %v1113
    %v1502 = vunpack.c.h.b16 %v1113
    %v1503 = vunpack.c.l.b16 %v1114
    %v1504 = vunpack.c.h.b16 %v1114
    %v1505 = vunpack.c.l.b16 %v1115
    %v1506 = vunpack.c.h.b16 %v1115
    %v1507 = vunpack.c.l.b16 %v1116
    %v1508 = vunpack.c.h.b16 %v1116
    %v1509 = vunpack.c.l.b16 %v1117
    %v1510 = vunpack.c.h.b16 %v1117
    %v1511 = vunpack.c.l.b16 %v1118
    %v1512 = vunpack.c.h.b16 %v1118
    %v1513 = vunpack.c.l.b16 %v1119
    %v1514 = vunpack.c.h.b16 %v1119
    %v1515 = vunpack.c.l.b16 %v1120
    %v1516 = vunpack.c.h.b16 %v1120
    %v1517 = vunpack.c.l.b16 %v1121
    %v1518 = vunpack.c.h.b16 %v1121
    %v1519 = vunpack.c.l.b16 %v1122
    %v1520 = vunpack.c.h.b16 %v1122
    %v1521 = vunpack.c.l.b16 %v1123
    %v1522 = vunpack.c.h.b16 %v1123
    %v1523 = vunpack.c.l.b16 %v1124
    %v1524 = vunpack.c.h.b16 %v1124
    %v1525 = vunpack.c.l.b16 %v1125
    %v1526 = vunpack.c.h.b16 %v1125
    %v1527 = vunpack.c.l.b16 %v1126
    %v1528 = vunpack.c.h.b16 %v1126
    %v1529 = vunpack.c.l.b16 %v1127
    %v1530 = vunpack.c.h.b16 %v1127
    %v1531 = vunpack.c.l.b16 %v1128
    %v1532 = vunpack.c.h.b16 %v1128
    %v1533 = vunpack.c.l.b16 %v1129
    %v1534 = vunpack.c.h.b16 %v1129
    %v1535 = vunpack.c.l.b16 %v1130
    %v1536 = vunpack.c.h.b16 %v1130
    %v1537 = vunpack.c.l.b16 %v1131
    %v1538 = vunpack.c.h.b16 %v1131
    %v1539 = vunpack.c.l.b16 %v1132
    %v1540 = vunpack.c.h.b16 %v1132
    %v1541 = vunpack.c.l.b16 %v1133
    %v1542 = vunpack.c.h.b16 %v1133
    %v1543 = vunpack.c.l.b16 %v1134
    %v1544 = vunpack.c.h.b16 %v1134
    %v1545 = vunpack.c.l.b16 %v1135
    %v1546 = vunpack.c.h.b16 %v1135
    %v1547 = vunpack.c.l.b16 %v1136
    %v1548 = vunpack.c.h.b16 %v1136
    %v1549 = vunpack.c.l.b16 %v1137
    %v1550 = vunpack.c.h.b16 %v1137
    %v1551 = vunpack.c.l.b16 %v1138
    %v1552 = vunpack.c.h.b16 %v1138
    %v1553 = vunpack.c.l.b16 %v1139
    %v1554 = vunpack.c.h.b16 %v1139
    %v1555 = vunpack.c.l.b16 %v1140
    %v1556 = vunpack.c.h.b16 %v1140
    %v1557 = vunpack.c.l.b16 %v1141
    %v1558 = vunpack.c.h.b16 %v1141
    %v1559 = vunpack.c.l.b16 %v1142
    %v1560 = vunpack.c.h.b16 %v1142
    %v1561 = vunpack.c.l.b16 %v1143
    %v1562 = vunpack.c.h.b16 %v1143
    %v1563 = vunpack.c.l.b16 %v1144
    %v1564 = vunpack.c.h.b16 %v1144
    %v1565 = vunpack.c.l.b16 %v1145
    %v1566 = vunpack.c.h.b16 %v1145
    %v1567 = vunpack.c.l.b16 %v1146
    %v1568 = vunpack.c.h.b16 %v1146
    %v1569 = vunpack.c.l.b16 %v1147
    %v1570 = vunpack.c.h.b16 %v1147
    %v1571 = vunpack.c.l.b16 %v1148
    %v1572 = vunpack.c.h.b16 %v1148
    %v1573 = vunpack.c.l.b16 %v1149
    %v1574 = vunpack.c.h.b16 %v1149
    %v1575 = vunpack.c.l.b16 %v1150
    %v1576 = vunpack.c.h.b16 %v1150
    %v1577 = vunpack.c.l.b16 %v1151
    %v1578 = vunpack.c.h.b16 %v1151
    %v1579 = vunpack.c.l.b16 %v1152
    %v1580 = vunpack.c.h.b16 %v1152
    %v1581 = vunpack.c.l.b16 %v1153
    %v1582 = vunpack.c.h.b16 %v1153
    %v1583 = vunpack.c.l.b16 %v1154
    %v1584 = vunpack.c.h.b16 %v1154
    %v1585 = vunpack.c.l.b16 %v1155
    %v1586 = vunpack.c.h.b16 %v1155
    %v1587 = vunpack.c.l.b16 %v1156
    %v1588 = vunpack.c.h.b16 %v1156
    %v1589 = vunpack.c.l.b16 %v1157
    %v1590 = vunpack.c.h.b16 %v1157
    %v1591 = vunpack.c.l.b16 %v1158
    %v1592 = vunpack.c.h.b16 %v1158
    %v1593 = vunpack.c.l.b16 %v1159
    %v1594 = vunpack.c.h.b16 %v1159
    %v1595 = vpack.c.b16 %v1343, %v1339
    %v1596 = vpack.c.b16 %v1344, %v1340
    %v1597 = vpack.c.b16 %v1345, %v1341
    %v1598 = vpack.c.b16 %v1346, %v1342
    %v1599 = vpack.c.b16 %v1351, %v1347
    %v1600 = vpack.c.b16 %v1352, %v1348
    %v1601 = vpack.c.b16 %v1353, %v1349
    %v1602 = vpack.c.b16 %v1354, %v1350
    %v1603 = vpack.c.b16 %v1359, %v1355
    %v1604 = vpack.c.b16 %v1360, %v1356
    %v1605 = vpack.c.b16 %v1361, %v1357
    %v1606 = vpack.c.b16 %v1362, %v1358
    %v1607 = vpack.c.b16 %v1367, %v1363
    %v1608 = vpack.c.b16 %v1368, %v1364
    %v1609 = vpack.c.b16 %v1369, %v1365
    %v1610 = vpack.c.b16 %v1370, %v1366
    %v1611 = vpack.c.b16 %v1375, %v1371
    %v1612 = vpack.c.b16 %v1376, %v1372
    %v1613 = vpack.c.b16 %v1377, %v1373
    %v1614 = vpack.c.b16 %v1378, %v1374
    %v1615 = vpack.c.b16 %v1383, %v1379
    %v1616 = vpack.c.b16 %v1384, %v1380
    %v1617 = vpack.c.b16 %v1385, %v1381
    %v1618 = vpack.c.b16 %v1386, %v1382
    %v1619 = vpack.c.b16 %v1391, %v1387
    %v1620 = vpack.c.b16 %v1392, %v1388
    %v1621 = vpack.c.b16 %v1393, %v1389
    %v1622 = vpack.c.b16 %v1394, %v1390
    %v1623 = vpack.c.b16 %v1399, %v1395
    %v1624 = vpack.c.b16 %v1400, %v1396
    %v1625 = vpack.c.b16 %v1401, %v1397
    %v1626 = vpack.c.b16 %v1402, %v1398
    %v1627 = vpack.c.b16 %v1407, %v1403
    %v1628 = vpack.c.b16 %v1408, %v1404
    %v1629 = vpack.c.b16 %v1409, %v1405
    %v1630 = vpack.c.b16 %v1410, %v1406
    %v1631 = vpack.c.b16 %v1415, %v1411
    %v1632 = vpack.c.b16 %v1416, %v1412
    %v1633 = vpack.c.b16 %v1417, %v1413
    %v1634 = vpack.c.b16 %v1418, %v1414
    %v1635 = vpack.c.b16 %v1423, %v1419
    %v1636 = vpack.c.b16 %v1424, %v1420
    %v1637 = vpack.c.b16 %v1425, %v1421
    %v1638 = vpack.c.b16 %v1426, %v1422
    %v1639 = vpack.c.b16 %v1431, %v1427
    %v1640 = vpack.c.b16 %v1432, %v1428
    %v1641 = vpack.c.b16 %v1433, %v1429
    %v1642 = vpack.c.b16 %v1434, %v1430
    %v1643 = vpack.c.b16 %v1439, %v1435
    %v1644 = vpack.c.b16 %v1440, %v1436
    %v1645 = vpack.c.b16 %v1441, %v1437
    %v1646 = vpack.c.b16 %v1442, %v1438
    %v1647 = vpack.c.b16 %v1447, %v1443
    %v1648 = vpack.c.b16 %v1448, %v1444
    %v1649 = vpack.c.b16 %v1449, %v1445
    %v1650 = vpack.c.b16 %v1450, %v1446
    %v1651 = vpack.c.b16 %v1455, %v1451
    %v1652 = vpack.c.b16 %v1456, %v1452
    %v1653 = vpack.c.b16 %v1457, %v1453
    %v1654 = vpack.c.b16 %v1458, %v1454
    %v1655 = vpack.c.b16 %v1463, %v1459
    %v1656 = vpack.c.b16 %v1464, %v1460
    %v1657 = vpack.c.b16 %v1465, %v1461
    %v1658 = vpack.c.b16 %v1466, %v1462
    %v1659 = vpack.c.b16 %v1471, %v1467
    %v1660 = vpack.c.b16 %v1472, %v1468
    %v1661 = vpack.c.b16 %v1473, %v1469
    %v1662 = vpack.c.b16 %v1474, %v1470
    %v1663 = vpack.c.b16 %v1479, %v1475
    %v1664 = vpack.c.b16 %v1480, %v1476
    %v1665 = vpack.c.b16 %v1481, %v1477
    %v1666 = vpack.c.b16 %v1482, %v1478
    %v1667 = vpack.c.b16 %v1487, %v1483
    %v1668 = vpack.c.b16 %v1488, %v1484
    %v1669 = vpack.c.b16 %v1489, %v1485
    %v1670 = vpack.c.b16 %v1490, %v1486
    %v1671 = vpack.c.b16 %v1495, %v1491
    %v1672 = vpack.c.b16 %v1496, %v1492
    %v1673 = vpack.c.b16 %v1497, %v1493
    %v1674 = vpack.c.b16 %v1498, %v1494
    %v1675 = vpack.c.b16 %v1503, %v1499
    %v1676 = vpack.c.b16 %v1504, %v1500
    %v1677 = vpack.c.b16 %v1505, %v1501
    %v1678 = vpack.c.b16 %v1506, %v1502
    %v1679 = vpack.c.b16 %v1511, %v1507
    %v1680 = vpack.c.b16 %v1512, %v1508
    %v1681 = vpack.c.b16 %v1513, %v1509
    %v1682 = vpack.c.b16 %v1514, %v1510
    %v1683 = vpack.c.b16 %v1519, %v1515
    %v1684 = vpack.c.b16 %v1520, %v1516
    %v1685 = vpack.c.b16 %v1521, %v1517
    %v1686 = vpack.c.b16 %v1522, %v1518
    %v1687 = vpack.c.b16 %v1527, %v1523
    %v1688 = vpack.c.b16 %v1528, %v1524
    %v1689 = vpack.c.b16 %v1529, %v1525
    %v1690 = vpack.c.b16 %v1530, %v1526
    %v1691 = vpack.c.b16 %v1535, %v1531
    %v1692 = vpack.c.b16 %v1536, %v1532
    %v1693 = vpack.c.b16 %v1537, %v1533
    %v1694 = vpack.c.b16 %v1538, %v1534
    %v1695 = vpack.c.b16 %v1543, %v1539
    %v1696 = vpack.c.b16 %v1544, %v1540
    %v1697 = vpack.c.b16 %v1545, %v1541
    %v1698 = vpack.c.b16 %v1546, %v1542
    %v1699 = vpack.c.b16 %v1551, %v1547
    %v1700 = vpack.c.b16 %v1552, %v1548
    %v1701 = vpack.c.b16 %v1553, %v1549
    %v1702 = vpack.c.b16 %v1554, %v1550
    %v1703 = vpack.c.b16 %v1559, %v1555
    %v1704 = vpack.c.b16 %v1560, %v1556
    %v1705 = vpack.c.b16 %v1561, %v1557
    %v1706 = vpack.c.b16 %v1562, %v1558
    %v1707 = vpack.c.b16 %v1567, %v1563
    %v1708 = vpack.c.b16 %v1568, %v1564
    %v1709 = vpack.c.b16 %v1569, %v1565
    %v1710 = vpack.c.b16 %v1570, %v1566
    %v1711 = vpack.c.b16 %v1575, %v1571
    %v1712 = vpack.c.b16 %v1576, %v1572
    %v1713 = vpack.c.b16 %v1577, %v1573
    %v1714 = vpack.c.b16 %v1578, %v1574
    %v1715 = vpack.c.b16 %v1583, %v1579
    %v1716 = vpack.c.b16 %v1584, %v1580
    %v1717 = vpack.c.b16 %v1585, %v1581
    %v1718 = vpack.c.b16 %v1586, %v1582
    %v1719 = vpack.c.b16 %v1591, %v1587
    %v1720 = vpack.c.b16 %v1592, %v1588
    %v1721 = vpack.c.b16 %v1593, %v1589
    %v1722 = vpack.c.b16 %v1594, %v1590
    %1851 = vmatprep.subr.bf16.mxu0 %v1596
    %1852 = vmatpush1.bf16.msra.mxu0 %v1595
    %1853 = vmatprep.subr.bf16.mxu0 %v1600
    %1854 = vmatpush1.bf16.msra.mxu0 %v1599
    %1855 = vmatprep.subr.bf16.mxu0 %v1604
    %1856 = vmatpush1.bf16.msra.mxu0 %v1603
    %1857 = vmatprep.subr.bf16.mxu0 %v1608
    %1858 = vmatpush1.bf16.msra.mxu0 %v1607
    %1859 = vmatprep.subr.bf16.mxu0 %v1612
    %1860 = vmatpush1.bf16.msra.mxu0 %v1611
    %1861 = vmatprep.subr.bf16.mxu0 %v1616
    %1862 = vmatpush1.bf16.msra.mxu0 %v1615
    %1863 = vmatprep.subr.bf16.mxu0 %v1620
    %1864 = vmatpush1.bf16.msra.mxu0 %v1619
    %1865 = vmatprep.subr.bf16.mxu0 %v1624
    %1866 = vmatpush1.bf16.msra.mxu0 %v1623
    %1867 = vmatprep.subr.bf16.mxu0 %v1628
    %1868 = vmatpush1.bf16.msra.mxu0 %v1627
    %1869 = vmatprep.subr.bf16.mxu0 %v1632
    %1870 = vmatpush1.bf16.msra.mxu0 %v1631
    %1871 = vmatprep.subr.bf16.mxu0 %v1636
    %1872 = vmatpush1.bf16.msra.mxu0 %v1635
    %1873 = vmatprep.subr.bf16.mxu0 %v1640
    %1874 = vmatpush1.bf16.msra.mxu0 %v1639
    %1875 = vmatprep.subr.bf16.mxu0 %v1644
    %1876 = vmatpush1.bf16.msra.mxu0 %v1643
    %1877 = vmatprep.subr.bf16.mxu0 %v1648
    %1878 = vmatpush1.bf16.msra.mxu0 %v1647
    %1879 = vmatprep.subr.bf16.mxu0 %v1652
    %1880 = vmatpush1.bf16.msra.mxu0 %v1651
    %1881 = vmatprep.subr.bf16.mxu0 %v1656
    %1882 = vmatpush1.bf16.msra.mxu0 %v1655
    %1883 = vmatprep.mubr.bf16.mxu0 %v1204
    %1884 = vmatmul.mubr.bf16.gmra.mrb[0].mxu0 %v1197
    %v1885 = vpop.f32.mrb[0].mxu0
    %v1886 = vadd.f32 %v1165, %v1885
    %v1887 = vpop.f32.mrb[0].mxu0
    %v1888 = vadd.f32 %v1169, %v1887
    %v1889 = vpop.f32.mrb[0].mxu0
    %v1890 = vpop.f32.mrb[0].mxu0
    %1891 = vdwg.mxu0
    %1892 = vmatprep.subr.bf16.mxu0 %v1660
    %1893 = vmatpush1.bf16.msra.mxu0 %v1659
    %1894 = vmatprep.subr.bf16.mxu0 %v1664
    %1895 = vmatpush1.bf16.msra.mxu0 %v1663
    %1896 = vmatprep.subr.bf16.mxu0 %v1668
    %1897 = vmatpush1.bf16.msra.mxu0 %v1667
    %1898 = vmatprep.subr.bf16.mxu0 %v1672
    %1899 = vmatpush1.bf16.msra.mxu0 %v1671
    %1900 = vmatprep.subr.bf16.mxu0 %v1676
    %1901 = vmatpush1.bf16.msra.mxu0 %v1675
    %1902 = vmatprep.subr.bf16.mxu0 %v1680
    %1903 = vmatpush1.bf16.msra.mxu0 %v1679
    %1904 = vmatprep.subr.bf16.mxu0 %v1684
    %1905 = vmatpush1.bf16.msra.mxu0 %v1683
    %1906 = vmatprep.subr.bf16.mxu0 %v1688
    %1907 = vmatpush1.bf16.msra.mxu0 %v1687
    %1908 = vmatprep.subr.bf16.mxu0 %v1692
    %1909 = vmatpush1.bf16.msra.mxu0 %v1691
    %1910 = vmatprep.subr.bf16.mxu0 %v1696
    %1911 = vmatpush1.bf16.msra.mxu0 %v1695
    %1912 = vmatprep.subr.bf16.mxu0 %v1700
    %1913 = vmatpush1.bf16.msra.mxu0 %v1699
    %1914 = vmatprep.subr.bf16.mxu0 %v1704
    %1915 = vmatpush1.bf16.msra.mxu0 %v1703
    %1916 = vmatprep.subr.bf16.mxu0 %v1708
    %1917 = vmatpush1.bf16.msra.mxu0 %v1707
    %1918 = vmatprep.subr.bf16.mxu0 %v1712
    %1919 = vmatpush1.bf16.msra.mxu0 %v1711
    %1920 = vmatprep.subr.bf16.mxu0 %v1716
    %1921 = vmatpush1.bf16.msra.mxu0 %v1715
    %1922 = vmatprep.subr.bf16.mxu0 %v1720
    %1923 = vmatpush1.bf16.msra.mxu0 %v1719
    %1924 = vmatprep.mubr.bf16.mxu0 %v1206
    %1925 = vmatmul.mubr.bf16.gmra.mrb[0].mxu0 %v1205
    %v1926 = vpop.f32.mrb[0].mxu0
    %v1927 = vadd.f32 %v1886, %v1926
    %v1928 = vpop.f32.mrb[0].mxu0
    %v1929 = vadd.f32 %v1888, %v1928
    %v1930 = vpop.f32.mrb[0].mxu0
    %v1931 = vpop.f32.mrb[0].mxu0
    %1932 = vdwg.mxu0
    %1933 = vmatprep.subr.bf16.mxu0 %v1598
    %1934 = vmatpush1.bf16.msra.mxu0 %v1597
    %1935 = vmatprep.subr.bf16.mxu0 %v1602
    %1936 = vmatpush1.bf16.msra.mxu0 %v1601
    %1937 = vmatprep.subr.bf16.mxu0 %v1606
    %1938 = vmatpush1.bf16.msra.mxu0 %v1605
    %1939 = vmatprep.subr.bf16.mxu0 %v1610
    %1940 = vmatpush1.bf16.msra.mxu0 %v1609
    %1941 = vmatprep.subr.bf16.mxu0 %v1614
    %1942 = vmatpush1.bf16.msra.mxu0 %v1613
    %1943 = vmatprep.subr.bf16.mxu0 %v1618
    %1944 = vmatpush1.bf16.msra.mxu0 %v1617
    %1945 = vmatprep.subr.bf16.mxu0 %v1622
    %1946 = vmatpush1.bf16.msra.mxu0 %v1621
    %1947 = vmatprep.subr.bf16.mxu0 %v1626
    %1948 = vmatpush1.bf16.msra.mxu0 %v1625
    %1949 = vmatprep.subr.bf16.mxu0 %v1630
    %1950 = vmatpush1.bf16.msra.mxu0 %v1629
    %1951 = vmatprep.subr.bf16.mxu0 %v1634
    %1952 = vmatpush1.bf16.msra.mxu0 %v1633
    %1953 = vmatprep.subr.bf16.mxu0 %v1638
    %1954 = vmatpush1.bf16.msra.mxu0 %v1637
    %1955 = vmatprep.subr.bf16.mxu0 %v1642
    %1956 = vmatpush1.bf16.msra.mxu0 %v1641
    %1957 = vmatprep.subr.bf16.mxu0 %v1646
    %1958 = vmatpush1.bf16.msra.mxu0 %v1645
    %1959 = vmatprep.subr.bf16.mxu0 %v1650
    %1960 = vmatpush1.bf16.msra.mxu0 %v1649
    %1961 = vmatprep.subr.bf16.mxu0 %v1654
    %1962 = vmatpush1.bf16.msra.mxu0 %v1653
    %1963 = vmatprep.subr.bf16.mxu0 %v1658
    %1964 = vmatpush1.bf16.msra.mxu0 %v1657
    %1965 = vmatprep.mubr.bf16.mxu0 %v1204
    %1966 = vmatmul.mubr.bf16.gmra.mrb[0].mxu0 %v1197
    %v1967 = vpop.f32.mrb[0].mxu0
    %v1968 = vadd.f32 %v1173, %v1967
    %v1969 = vpop.f32.mrb[0].mxu0
    %v1970 = vadd.f32 %v1177, %v1969
    %v1971 = vpop.f32.mrb[0].mxu0
    %v1972 = vpop.f32.mrb[0].mxu0
    %1973 = vdwg.mxu0
    %1974 = vmatprep.subr.bf16.mxu0 %v1662
    %1975 = vmatpush1.bf16.msra.mxu0 %v1661
    %1976 = vmatprep.subr.bf16.mxu0 %v1666
    %1977 = vmatpush1.bf16.msra.mxu0 %v1665
    %1978 = vmatprep.subr.bf16.mxu0 %v1670
    %1979 = vmatpush1.bf16.msra.mxu0 %v1669
    %1980 = vmatprep.subr.bf16.mxu0 %v1674
    %1981 = vmatpush1.bf16.msra.mxu0 %v1673
    %1982 = vmatprep.subr.bf16.mxu0 %v1678
    %1983 = vmatpush1.bf16.msra.mxu0 %v1677
    %1984 = vmatprep.subr.bf16.mxu0 %v1682
    %1985 = vmatpush1.bf16.msra.mxu0 %v1681
    %1986 = vmatprep.subr.bf16.mxu0 %v1686
    %1987 = vmatpush1.bf16.msra.mxu0 %v1685
    %1988 = vmatprep.subr.bf16.mxu0 %v1690
    %1989 = vmatpush1.bf16.msra.mxu0 %v1689
    %1990 = vmatprep.subr.bf16.mxu0 %v1694
    %1991 = vmatpush1.bf16.msra.mxu0 %v1693
    %1992 = vmatprep.subr.bf16.mxu0 %v1698
    %1993 = vmatpush1.bf16.msra.mxu0 %v1697
    %1994 = vmatprep.subr.bf16.mxu0 %v1702
    %1995 = vmatpush1.bf16.msra.mxu0 %v1701
    %1996 = vmatprep.subr.bf16.mxu0 %v1706
    %1997 = vmatpush1.bf16.msra.mxu0 %v1705
    %1998 = vmatprep.subr.bf16.mxu0 %v1710
    %1999 = vmatpush1.bf16.msra.mxu0 %v1709
    %2000 = vmatprep.subr.bf16.mxu0 %v1714
    %2001 = vmatpush1.bf16.msra.mxu0 %v1713
    %2002 = vmatprep.subr.bf16.mxu0 %v1718
    %2003 = vmatpush1.bf16.msra.mxu0 %v1717
    %2004 = vmatprep.subr.bf16.mxu0 %v1722
    %2005 = vmatpush1.bf16.msra.mxu0 %v1721
    %2006 = vmatprep.mubr.bf16.mxu0 %v1206
    %2007 = vmatmul.mubr.bf16.gmra.mrb[0].mxu0 %v1205
    %v2008 = vpop.f32.mrb[0].mxu0
    %v2009 = vadd.f32 %v1968, %v2008
    %v2010 = vpop.f32.mrb[0].mxu0
    %v2011 = vadd.f32 %v1970, %v2010
    %v2012 = vpop.f32.mrb[0].mxu0
    %v2013 = vpop.f32.mrb[0].mxu0
    %2014 = vdwg.mxu0
    %v2019 = vcombine.low %v1927, %v1929
    %v2020 = vcombine.low %v2009, %v2011
    %v2022 = vunpack.c.l.s4 1983009808
    %v2023 = vunpack.c.0.s8 %v2022
    %v2024 = vlaneseq
    %v2025 = vshrl.u32 %v2024, 7
    %v2026 = vsub.s32 %v2023, %v2025
    %v2027 = vrot.slane %v2019, %v2026
    %v2029 = vunpack.c.l.s4 1983009808
    %v2030 = vunpack.c.0.s8 %v2029
    %v2031 = vlaneseq
    %v2032 = vshrl.u32 %v2031, 7
    %v2033 = vsub.s32 %v2030, %v2032
    %v2034 = vrot.slane %v2020, %v2033
    %v2035 = vcombine.low %v2027, %v2034
    %2037 = vst [vmem:[#allocation6] sm:$0xff] %v2035
    // Predicated region
    $region34: #{tpu_custom_call.1} parent=1 // pred_check
      _
    $region35: #{tpu_custom_call.1} parent=1 // pred_check_branch
      %2039 = sbr.rel (0) target = $region37
    $region36: #{tpu_custom_call.1} parent=1 // pred_region
      %s2041 = ssub.s32 128, 128
      %2042 = vsyncadd [#allocation5], %s2041
      %s2044 = sshll.u32 [#allocation6], 4
      %s2045 = int_to_ptr.vmem [resolvable:$true] %s2044
      %2047 = dma.vmem_to_hbm [thread:$0]  %s2045, 128, %s7, [#allocation5]
    $region37: #{tpu_custom_call.1} parent=1 // pred_fallthru
      _
    // Predicated region
    $region38: #{tpu_custom_call.1} parent=1 // pred_check
      _
    $region39: #{tpu_custom_call.1} parent=1 // pred_check_branch
      %2049 = sbr.rel (0) target = $region41
    $region40: #{tpu_custom_call.1} parent=1 // pred_region
      %2050 = dma.done [#allocation5], 128
    $region41: #{tpu_custom_call.1} parent=1 // pred_fallthru
      _
    %2051 = vsyncpa [#allocation4], 1
    %2052 = vsyncpa [#allocation5], 1

</llo_original>
